<compile_context>
chip_gen: v6e
topology: v6e:2x2x1
jax: 0.10.0
libtpu: 0.0.40
codegen_flags: <defaults>
</compile_context>

<pallas_src>
import math

import numpy as np
import jax
import jax.numpy as jnp
from jax import lax
from jax.experimental import pallas as pl
from jax.experimental.pallas import tpu as pltpu


def gru_decoder_kernel(gi_ref, whh_ref, bhhn_ref, wa_ref, ba_ref, o_ref, hseq_scr):
    """One grid step == one block of TB batch rows, time-major layout.

    gi_ref:  (T, TB, 3H)  precomputed input projection x@W_ih^T + (b_ih + b_hh[r,z] folded)
    whh_ref: (H, 3H)      GRU hidden weights (pre-transposed W_hh^T), NO bias applied in-loop
    bhhn_ref:(1, H)       hidden bias of the n-gate only (must stay inside the r* term)
    wa_ref:  (T, T)       attention Linear weight (PyTorch layout: out x in)
    ba_ref:  (T, 1)       attention Linear bias (as column)
    o_ref:   (T, TB*H)    lane-dense output slab (time-major, flattened batch*hidden)
    hseq_scr:(T, TB, H)   VMEM scratch holding all GRU hidden states
    """
    T, TB, H3 = gi_ref.shape
    H = H3 // 3

    whh = whh_ref[...]
    bhh_n = bhhn_ref[...]                               # (1, H)

    # Recurrence over T, batched over TB rows; fully unrolled (T is static & small),
    # so slices and scratch stores are static-indexed.
    h = jnp.zeros((TB, H), jnp.float32)
    for t in range(T):
        gi = gi_ref[t]                                  # (TB, 3H)
        gh = jnp.dot(h, whh, preferred_element_type=jnp.float32)   # (TB, 3H), no bias add
        rz = jax.nn.sigmoid(gi[:, :2 * H] + gh[:, :2 * H])         # fused r|z sigmoid
        r = rz[:, :H]
        z = rz[:, H:]
        n = jnp.tanh(gi[:, 2 * H:] + r * (gh[:, 2 * H:] + bhh_n))
        h = n + z * (h - n)                             # == (1-z)*n + z*h
        hseq_scr[t] = h

    # DecoderAttentionLayer in transposed (time-major) form:
    #   scores[t, (b,h)] = sum_s Wa[t,s] * hseq[s,b,h] + ba[t]; softmax over t.
    h_all = hseq_scr[...].reshape(T, TB * H)            # single sublane->lane relayout
    scores = jnp.dot(wa_ref[...], h_all,
                     preferred_element_type=jnp.float32) + ba_ref[...]
    m = jnp.max(scores, axis=0, keepdims=True)
    e = jnp.exp(scores - m)
    denom = jnp.sum(e, axis=0, keepdims=True)
    att = e * pl.reciprocal(denom, approx=False)        # exact, stays within 1e-5 check
    o_ref[...] = (h_all * att).astype(o_ref.dtype)


def _num_tensorcores():
    """2 grid steps only on dual-TC v7x; single-TC v5e/v6e get one big block."""
    try:
        kind = jax.devices()[0].device_kind.lower()
        if "v7" in kind or "7x" in kind:
            return 2
    except Exception:
        pass
    return 1


def gru_sequential_decoder(x, params, num_blocks=None):
    B, T, H = x.shape
    if num_blocks is None:
        num_blocks = _num_tensorcores()

    # Alignment when the grid actually splits: TB must be a multiple of 8 (sublanes)
    # and TB*H a multiple of 128 (lane-dense output slab).
    lane_align = 128 // math.gcd(H, 128)
    tb_align = (8 * lane_align) // math.gcd(8, lane_align)   # lcm(8, lane_align)
    if num_blocks > 1 and B < num_blocks * tb_align:
        num_blocks = 1                                        # too small to split usefully

    if num_blocks == 1:
        TB, B_pad = B, B
    else:
        TB = pl.cdiv(pl.cdiv(B, num_blocks), tb_align) * tb_align
        B_pad = TB * num_blocks
        assert TB % 8 == 0 and (TB * H) % 128 == 0

    # --- Hoisted input projection in the XLA wrapper (one big MXU matmul) -------------
    w_ih, w_hh = params["w_ih"], params["w_hh"]
    b_ih, b_hh = params["b_ih"], params["b_hh"]
    # Fold the r/z hidden biases into the projection bias; keep the n-gate hidden bias
    # separate (PyTorch applies it inside the r* term).
    b_fold = jnp.concatenate([b_ih[:2 * H] + b_hh[:2 * H], b_ih[2 * H:]])
    gi = jnp.dot(x.reshape(B * T, H), jnp.transpose(w_ih)).reshape(B, T, 3 * H) + b_fold

    if B_pad != B:
        gi = jnp.concatenate(
            [gi, jnp.zeros((B_pad - B, T, 3 * H), gi.dtype)], axis=0)
    gi_tm = jnp.transpose(gi, (1, 0, 2))                 # (T, B_pad, 3H), time-major

    whh_t = jnp.transpose(w_hh)                          # (H, 3H)
    bhh_n = b_hh[2 * H:].reshape(1, H)                   # (1, H)
    wa = params["w_att"]                                 # (T, T)
    ba = params["b_att"].reshape(T, 1)

    out_flat = pl.pallas_call(
        gru_decoder_kernel,
        out_shape=jax.ShapeDtypeStruct((T, B_pad * H), x.dtype),
        grid_spec=pltpu.PrefetchScalarGridSpec(
            num_scalar_prefetch=0,
            grid=(num_blocks,),
            in_specs=[
                pl.BlockSpec((T, TB, 3 * H), lambda b: (0, b, 0)),
                pl.BlockSpec((H, 3 * H), lambda b: (0, 0)),
                pl.BlockSpec((1, H), lambda b: (0, 0)),
                pl.BlockSpec((T, T), lambda b: (0, 0)),
                pl.BlockSpec((T, 1), lambda b: (0, 0)),
            ],
            out_specs=pl.BlockSpec((T, TB * H), lambda b: (0, b)),
            scratch_shapes=[pltpu.VMEM((T, TB, H), jnp.float32)],
        ),
        compiler_params=pltpu.CompilerParams(
            dimension_semantics=("parallel",)),
    )(gi_tm, whh_t, bhh_n, wa, ba)

    out = jnp.transpose(out_flat.reshape(T, B_pad, H), (1, 0, 2))    # (B_pad, T, H)
    return out[:B]


def reference(x, params):
    """Pure-JAX replica of the PyTorch forward (eval mode)."""
    B, T, H = x.shape
    w_ih, w_hh = params["w_ih"], params["w_hh"]
    b_ih, b_hh = params["b_ih"], params["b_hh"]

    def cell(h, x_t):
        gi = x_t @ w_ih.T + b_ih
        gh = h @ w_hh.T + b_hh
        r = jax.nn.sigmoid(gi[:, :H] + gh[:, :H])
        z = jax.nn.sigmoid(gi[:, H:2 * H] + gh[:, H:2 * H])
        n = jnp.tanh(gi[:, 2 * H:] + r * gh[:, 2 * H:])
        h_new = (1.0 - z) * n + z * h
        return h_new, h_new

    h0 = jnp.zeros((B, H), x.dtype)
    _, hs = lax.scan(cell, h0, jnp.swapaxes(x, 0, 1))
    hs = jnp.swapaxes(hs, 0, 1)                                   # (B, T, H)

    xt = jnp.swapaxes(hs, 1, 2)                                   # (B, H, T)
    s = xt @ params["w_att"].T + params["b_att"]
    a = jax.nn.softmax(s, axis=-1)
    a = jnp.swapaxes(a, 1, 2)                                     # (B, T, H)
    return hs * a


def init_params(key, hidden, max_ion):
    """Deterministic init matching PyTorch parameter shapes."""
    k = 1.0 / np.sqrt(hidden)
    ks = jax.random.split(key, 6)
    return {
        "w_ih": jax.random.uniform(ks[0], (3 * hidden, hidden), jnp.float32, -k, k),
        "w_hh": jax.random.uniform(ks[1], (3 * hidden, hidden), jnp.float32, -k, k),
        "b_ih": jax.random.uniform(ks[2], (3 * hidden,), jnp.float32, -k, k),
        "b_hh": jax.random.uniform(ks[3], (3 * hidden,), jnp.float32, -k, k),
        "w_att": jax.random.uniform(ks[4], (max_ion, max_ion), jnp.float32, -k, k),
        "b_att": jax.random.uniform(ks[5], (max_ion,), jnp.float32, -k, k),
    }


if __name__ == "__main__":
    B, T, H = 16, 8, 32         # batch, max_ion (time steps), recurrent_layers_sizes[1]
    key = jax.random.PRNGKey(0)
    k_x, k_p = jax.random.split(key)
    x = jax.random.normal(k_x, (B, T, H), jnp.float32)
    params = init_params(k_p, H, T)

    # grid=(1,) on single-TC v5e/v6e (whole batch per step); grid=(2,) on dual-TC v7x.
    out = gru_sequential_decoder(x, params)
    out = jax.block_until_ready(out)

    ref = jax.block_until_ready(reference(x, params))
    np.testing.assert_allclose(np.asarray(out), np.asarray(ref), rtol=1e-5, atol=1e-5)
    print("KERNEL_OK")
</pallas_src>

<mosaic_0001>
module attributes {stable_mosaic.version = 11 : i64} {
  func.func @gru_decoder_kernel(%arg0: i32, %arg1: memref<8x16x96xf32, #tpu.memory_space<vmem>>, %arg2: memref<32x96xf32, #tpu.memory_space<vmem>>, %arg3: memref<1x32xf32, #tpu.memory_space<vmem>>, %arg4: memref<8x8xf32, #tpu.memory_space<vmem>>, %arg5: memref<8x1xf32, #tpu.memory_space<vmem>>, %arg6: memref<8x512xf32, #tpu.memory_space<vmem>>, %arg7: memref<8x16x32xf32, #tpu.memory_space<vmem>>) attributes {dimension_semantics = [#tpu.dimension_semantics<parallel>], iteration_bounds = array<i64: 1>, scalar_prefetch = 0 : i64, scratch_operands = 1 : i64, tpu.core_type = #tpu.core_type<tc>, window_params = [{transform_indices = @transform_0, window_bounds = array<i64: 8, 16, 96>}, {pipeline_mode = #tpu.pipeline_mode<synchronous>, transform_indices = @transform_1, window_bounds = array<i64: 32, 96>}, {pipeline_mode = #tpu.pipeline_mode<synchronous>, transform_indices = @transform_2, window_bounds = array<i64: 1, 32>}, {pipeline_mode = #tpu.pipeline_mode<synchronous>, transform_indices = @transform_3, window_bounds = array<i64: 8, 8>}, {pipeline_mode = #tpu.pipeline_mode<synchronous>, transform_indices = @transform_4, window_bounds = array<i64: 8, 1>}, {transform_indices = @transform_5, window_bounds = array<i64: 8, 512>}]} {
    %c0 = arith.constant 0 : index
    %c0_0 = arith.constant 0 : index
    %0 = vector.load %arg2[%c0, %c0_0] : memref<32x96xf32, #tpu.memory_space<vmem>>, vector<32x96xf32>
    %c0_1 = arith.constant 0 : index
    %c0_2 = arith.constant 0 : index
    %1 = vector.load %arg3[%c0_1, %c0_2] : memref<1x32xf32, #tpu.memory_space<vmem>>, vector<1x32xf32>
    %cst = arith.constant 0.000000e+00 : f32
    %2 = vector.broadcast %cst : f32 to vector<16x32xf32>
    %c0_3 = arith.constant 0 : index
    %c0_4 = arith.constant 0 : index
    %c0_5 = arith.constant 0 : index
    %3 = vector.load %arg1[%c0_3, %c0_4, %c0_5] : memref<8x16x96xf32, #tpu.memory_space<vmem>>, vector<1x16x96xf32>
    %4 = vector.shape_cast %3 : vector<1x16x96xf32> to vector<16x96xf32>
    %cst_6 = arith.constant dense<0.000000e+00> : vector<16x96xf32>
    %5 = tpu.matmul %2, %0, %cst_6 {dimension_numbers = #tpu.dot_dimension_numbers<[1], [0], [0], [1], [0, 0, 1, 1], [], []>} : vector<16x32xf32>, vector<32x96xf32>, vector<16x96xf32> -> vector<16x96xf32>
    %6 = vector.extract_strided_slice %4 {offsets = [0, 0], sizes = [16, 64], strides = [1, 1]} : vector<16x96xf32> to vector<16x64xf32>
    %7 = vector.extract_strided_slice %5 {offsets = [0, 0], sizes = [16, 64], strides = [1, 1]} : vector<16x96xf32> to vector<16x64xf32>
    %8 = arith.addf %6, %7 : vector<16x64xf32>
    %9 = arith.negf %8 : vector<16x64xf32>
    %10 = math.exp %9 : vector<16x64xf32>
    %cst_7 = arith.constant 1.000000e+00 : f32
    %11 = vector.broadcast %cst_7 : f32 to vector<16x64xf32>
    %12 = arith.addf %11, %10 : vector<16x64xf32>
    %13 = arith.divf %11, %12 : vector<16x64xf32>
    %14 = vector.extract_strided_slice %13 {offsets = [0, 0], sizes = [16, 32], strides = [1, 1]} : vector<16x64xf32> to vector<16x32xf32>
    %15 = vector.extract_strided_slice %13 {offsets = [0, 32], sizes = [16, 32], strides = [1, 1]} : vector<16x64xf32> to vector<16x32xf32>
    %16 = vector.extract_strided_slice %4 {offsets = [0, 64], sizes = [16, 32], strides = [1, 1]} : vector<16x96xf32> to vector<16x32xf32>
    %17 = vector.extract_strided_slice %5 {offsets = [0, 64], sizes = [16, 32], strides = [1, 1]} : vector<16x96xf32> to vector<16x32xf32>
    %18 = vector.broadcast %1 : vector<1x32xf32> to vector<16x32xf32>
    %19 = arith.addf %17, %18 : vector<16x32xf32>
    %20 = arith.mulf %14, %19 : vector<16x32xf32>
    %21 = arith.addf %16, %20 : vector<16x32xf32>
    %22 = math.tanh %21 : vector<16x32xf32>
    %23 = arith.subf %2, %22 : vector<16x32xf32>
    %24 = arith.mulf %15, %23 : vector<16x32xf32>
    %25 = arith.addf %22, %24 : vector<16x32xf32>
    %c0_8 = arith.constant 0 : index
    %c0_9 = arith.constant 0 : index
    %c0_10 = arith.constant 0 : index
    %26 = vector.load %arg7[%c0_8, %c0_9, %c0_10] : memref<8x16x32xf32, #tpu.memory_space<vmem>>, vector<1x16x32xf32>
    %27 = vector.shape_cast %26 : vector<1x16x32xf32> to vector<16x32xf32>
    %28 = vector.shape_cast %25 : vector<16x32xf32> to vector<1x16x32xf32>
    tpu.vector_store %arg7[%c0_8, %c0_9, %c0_10], %28 {strides = array<i32>} : memref<8x16x32xf32, #tpu.memory_space<vmem>>, vector<1x16x32xf32>,
    %c1 = arith.constant 1 : index
    %c0_11 = arith.constant 0 : index
    %c0_12 = arith.constant 0 : index
    %29 = vector.load %arg1[%c1, %c0_11, %c0_12] : memref<8x16x96xf32, #tpu.memory_space<vmem>>, vector<1x16x96xf32>
    %30 = vector.shape_cast %29 : vector<1x16x96xf32> to vector<16x96xf32>
    %cst_13 = arith.constant dense<0.000000e+00> : vector<16x96xf32>
    %31 = tpu.matmul %25, %0, %cst_13 {dimension_numbers = #tpu.dot_dimension_numbers<[1], [0], [0], [1], [0, 0, 1, 1], [], []>} : vector<16x32xf32>, vector<32x96xf32>, vector<16x96xf32> -> vector<16x96xf32>
    %32 = vector.extract_strided_slice %30 {offsets = [0, 0], sizes = [16, 64], strides = [1, 1]} : vector<16x96xf32> to vector<16x64xf32>
    %33 = vector.extract_strided_slice %31 {offsets = [0, 0], sizes = [16, 64], strides = [1, 1]} : vector<16x96xf32> to vector<16x64xf32>
    %34 = arith.addf %32, %33 : vector<16x64xf32>
    %35 = arith.negf %34 : vector<16x64xf32>
    %36 = math.exp %35 : vector<16x64xf32>
    %cst_14 = arith.constant 1.000000e+00 : f32
    %37 = vector.broadcast %cst_14 : f32 to vector<16x64xf32>
    %38 = arith.addf %37, %36 : vector<16x64xf32>
    %39 = arith.divf %37, %38 : vector<16x64xf32>
    %40 = vector.extract_strided_slice %39 {offsets = [0, 0], sizes = [16, 32], strides = [1, 1]} : vector<16x64xf32> to vector<16x32xf32>
    %41 = vector.extract_strided_slice %39 {offsets = [0, 32], sizes = [16, 32], strides = [1, 1]} : vector<16x64xf32> to vector<16x32xf32>
    %42 = vector.extract_strided_slice %30 {offsets = [0, 64], sizes = [16, 32], strides = [1, 1]} : vector<16x96xf32> to vector<16x32xf32>
    %43 = vector.extract_strided_slice %31 {offsets = [0, 64], sizes = [16, 32], strides = [1, 1]} : vector<16x96xf32> to vector<16x32xf32>
    %44 = vector.broadcast %1 : vector<1x32xf32> to vector<16x32xf32>
    %45 = arith.addf %43, %44 : vector<16x32xf32>
    %46 = arith.mulf %40, %45 : vector<16x32xf32>
    %47 = arith.addf %42, %46 : vector<16x32xf32>
    %48 = math.tanh %47 : vector<16x32xf32>
    %49 = arith.subf %25, %48 : vector<16x32xf32>
    %50 = arith.mulf %41, %49 : vector<16x32xf32>
    %51 = arith.addf %48, %50 : vector<16x32xf32>
    %c1_15 = arith.constant 1 : index
    %c0_16 = arith.constant 0 : index
    %c0_17 = arith.constant 0 : index
    %52 = vector.load %arg7[%c1_15, %c0_16, %c0_17] : memref<8x16x32xf32, #tpu.memory_space<vmem>>, vector<1x16x32xf32>
    %53 = vector.shape_cast %52 : vector<1x16x32xf32> to vector<16x32xf32>
    %54 = vector.shape_cast %51 : vector<16x32xf32> to vector<1x16x32xf32>
    tpu.vector_store %arg7[%c1_15, %c0_16, %c0_17], %54 {strides = array<i32>} : memref<8x16x32xf32, #tpu.memory_space<vmem>>, vector<1x16x32xf32>,
    %c2 = arith.constant 2 : index
    %c0_18 = arith.constant 0 : index
    %c0_19 = arith.constant 0 : index
    %55 = vector.load %arg1[%c2, %c0_18, %c0_19] : memref<8x16x96xf32, #tpu.memory_space<vmem>>, vector<1x16x96xf32>
    %56 = vector.shape_cast %55 : vector<1x16x96xf32> to vector<16x96xf32>
    %cst_20 = arith.constant dense<0.000000e+00> : vector<16x96xf32>
    %57 = tpu.matmul %51, %0, %cst_20 {dimension_numbers = #tpu.dot_dimension_numbers<[1], [0], [0], [1], [0, 0, 1, 1], [], []>} : vector<16x32xf32>, vector<32x96xf32>, vector<16x96xf32> -> vector<16x96xf32>
    %58 = vector.extract_strided_slice %56 {offsets = [0, 0], sizes = [16, 64], strides = [1, 1]} : vector<16x96xf32> to vector<16x64xf32>
    %59 = vector.extract_strided_slice %57 {offsets = [0, 0], sizes = [16, 64], strides = [1, 1]} : vector<16x96xf32> to vector<16x64xf32>
    %60 = arith.addf %58, %59 : vector<16x64xf32>
    %61 = arith.negf %60 : vector<16x64xf32>
    %62 = math.exp %61 : vector<16x64xf32>
    %cst_21 = arith.constant 1.000000e+00 : f32
    %63 = vector.broadcast %cst_21 : f32 to vector<16x64xf32>
    %64 = arith.addf %63, %62 : vector<16x64xf32>
    %65 = arith.divf %63, %64 : vector<16x64xf32>
    %66 = vector.extract_strided_slice %65 {offsets = [0, 0], sizes = [16, 32], strides = [1, 1]} : vector<16x64xf32> to vector<16x32xf32>
    %67 = vector.extract_strided_slice %65 {offsets = [0, 32], sizes = [16, 32], strides = [1, 1]} : vector<16x64xf32> to vector<16x32xf32>
    %68 = vector.extract_strided_slice %56 {offsets = [0, 64], sizes = [16, 32], strides = [1, 1]} : vector<16x96xf32> to vector<16x32xf32>
    %69 = vector.extract_strided_slice %57 {offsets = [0, 64], sizes = [16, 32], strides = [1, 1]} : vector<16x96xf32> to vector<16x32xf32>
    %70 = vector.broadcast %1 : vector<1x32xf32> to vector<16x32xf32>
    %71 = arith.addf %69, %70 : vector<16x32xf32>
    %72 = arith.mulf %66, %71 : vector<16x32xf32>
    %73 = arith.addf %68, %72 : vector<16x32xf32>
    %74 = math.tanh %73 : vector<16x32xf32>
    %75 = arith.subf %51, %74 : vector<16x32xf32>
    %76 = arith.mulf %67, %75 : vector<16x32xf32>
    %77 = arith.addf %74, %76 : vector<16x32xf32>
    %c2_22 = arith.constant 2 : index
    %c0_23 = arith.constant 0 : index
    %c0_24 = arith.constant 0 : index
    %78 = vector.load %arg7[%c2_22, %c0_23, %c0_24] : memref<8x16x32xf32, #tpu.memory_space<vmem>>, vector<1x16x32xf32>
    %79 = vector.shape_cast %78 : vector<1x16x32xf32> to vector<16x32xf32>
    %80 = vector.shape_cast %77 : vector<16x32xf32> to vector<1x16x32xf32>
    tpu.vector_store %arg7[%c2_22, %c0_23, %c0_24], %80 {strides = array<i32>} : memref<8x16x32xf32, #tpu.memory_space<vmem>>, vector<1x16x32xf32>,
    %c3 = arith.constant 3 : index
    %c0_25 = arith.constant 0 : index
    %c0_26 = arith.constant 0 : index
    %81 = vector.load %arg1[%c3, %c0_25, %c0_26] : memref<8x16x96xf32, #tpu.memory_space<vmem>>, vector<1x16x96xf32>
    %82 = vector.shape_cast %81 : vector<1x16x96xf32> to vector<16x96xf32>
    %cst_27 = arith.constant dense<0.000000e+00> : vector<16x96xf32>
    %83 = tpu.matmul %77, %0, %cst_27 {dimension_numbers = #tpu.dot_dimension_numbers<[1], [0], [0], [1], [0, 0, 1, 1], [], []>} : vector<16x32xf32>, vector<32x96xf32>, vector<16x96xf32> -> vector<16x96xf32>
    %84 = vector.extract_strided_slice %82 {offsets = [0, 0], sizes = [16, 64], strides = [1, 1]} : vector<16x96xf32> to vector<16x64xf32>
    %85 = vector.extract_strided_slice %83 {offsets = [0, 0], sizes = [16, 64], strides = [1, 1]} : vector<16x96xf32> to vector<16x64xf32>
    %86 = arith.addf %84, %85 : vector<16x64xf32>
    %87 = arith.negf %86 : vector<16x64xf32>
    %88 = math.exp %87 : vector<16x64xf32>
    %cst_28 = arith.constant 1.000000e+00 : f32
    %89 = vector.broadcast %cst_28 : f32 to vector<16x64xf32>
    %90 = arith.addf %89, %88 : vector<16x64xf32>
    %91 = arith.divf %89, %90 : vector<16x64xf32>
    %92 = vector.extract_strided_slice %91 {offsets = [0, 0], sizes = [16, 32], strides = [1, 1]} : vector<16x64xf32> to vector<16x32xf32>
    %93 = vector.extract_strided_slice %91 {offsets = [0, 32], sizes = [16, 32], strides = [1, 1]} : vector<16x64xf32> to vector<16x32xf32>
    %94 = vector.extract_strided_slice %82 {offsets = [0, 64], sizes = [16, 32], strides = [1, 1]} : vector<16x96xf32> to vector<16x32xf32>
    %95 = vector.extract_strided_slice %83 {offsets = [0, 64], sizes = [16, 32], strides = [1, 1]} : vector<16x96xf32> to vector<16x32xf32>
    %96 = vector.broadcast %1 : vector<1x32xf32> to vector<16x32xf32>
    %97 = arith.addf %95, %96 : vector<16x32xf32>
    %98 = arith.mulf %92, %97 : vector<16x32xf32>
    %99 = arith.addf %94, %98 : vector<16x32xf32>
    %100 = math.tanh %99 : vector<16x32xf32>
    %101 = arith.subf %77, %100 : vector<16x32xf32>
    %102 = arith.mulf %93, %101 : vector<16x32xf32>
    %103 = arith.addf %100, %102 : vector<16x32xf32>
    %c3_29 = arith.constant 3 : index
    %c0_30 = arith.constant 0 : index
    %c0_31 = arith.constant 0 : index
    %104 = vector.load %arg7[%c3_29, %c0_30, %c0_31] : memref<8x16x32xf32, #tpu.memory_space<vmem>>, vector<1x16x32xf32>
    %105 = vector.shape_cast %104 : vector<1x16x32xf32> to vector<16x32xf32>
    %106 = vector.shape_cast %103 : vector<16x32xf32> to vector<1x16x32xf32>
    tpu.vector_store %arg7[%c3_29, %c0_30, %c0_31], %106 {strides = array<i32>} : memref<8x16x32xf32, #tpu.memory_space<vmem>>, vector<1x16x32xf32>,
    %c4 = arith.constant 4 : index
    %c0_32 = arith.constant 0 : index
    %c0_33 = arith.constant 0 : index
    %107 = vector.load %arg1[%c4, %c0_32, %c0_33] : memref<8x16x96xf32, #tpu.memory_space<vmem>>, vector<1x16x96xf32>
    %108 = vector.shape_cast %107 : vector<1x16x96xf32> to vector<16x96xf32>
    %cst_34 = arith.constant dense<0.000000e+00> : vector<16x96xf32>
    %109 = tpu.matmul %103, %0, %cst_34 {dimension_numbers = #tpu.dot_dimension_numbers<[1], [0], [0], [1], [0, 0, 1, 1], [], []>} : vector<16x32xf32>, vector<32x96xf32>, vector<16x96xf32> -> vector<16x96xf32>
    %110 = vector.extract_strided_slice %108 {offsets = [0, 0], sizes = [16, 64], strides = [1, 1]} : vector<16x96xf32> to vector<16x64xf32>
    %111 = vector.extract_strided_slice %109 {offsets = [0, 0], sizes = [16, 64], strides = [1, 1]} : vector<16x96xf32> to vector<16x64xf32>
    %112 = arith.addf %110, %111 : vector<16x64xf32>
    %113 = arith.negf %112 : vector<16x64xf32>
    %114 = math.exp %113 : vector<16x64xf32>
    %cst_35 = arith.constant 1.000000e+00 : f32
    %115 = vector.broadcast %cst_35 : f32 to vector<16x64xf32>
    %116 = arith.addf %115, %114 : vector<16x64xf32>
    %117 = arith.divf %115, %116 : vector<16x64xf32>
    %118 = vector.extract_strided_slice %117 {offsets = [0, 0], sizes = [16, 32], strides = [1, 1]} : vector<16x64xf32> to vector<16x32xf32>
    %119 = vector.extract_strided_slice %117 {offsets = [0, 32], sizes = [16, 32], strides = [1, 1]} : vector<16x64xf32> to vector<16x32xf32>
    %120 = vector.extract_strided_slice %108 {offsets = [0, 64], sizes = [16, 32], strides = [1, 1]} : vector<16x96xf32> to vector<16x32xf32>
    %121 = vector.extract_strided_slice %109 {offsets = [0, 64], sizes = [16, 32], strides = [1, 1]} : vector<16x96xf32> to vector<16x32xf32>
    %122 = vector.broadcast %1 : vector<1x32xf32> to vector<16x32xf32>
    %123 = arith.addf %121, %122 : vector<16x32xf32>
    %124 = arith.mulf %118, %123 : vector<16x32xf32>
    %125 = arith.addf %120, %124 : vector<16x32xf32>
    %126 = math.tanh %125 : vector<16x32xf32>
    %127 = arith.subf %103, %126 : vector<16x32xf32>
    %128 = arith.mulf %119, %127 : vector<16x32xf32>
    %129 = arith.addf %126, %128 : vector<16x32xf32>
    %c4_36 = arith.constant 4 : index
    %c0_37 = arith.constant 0 : index
    %c0_38 = arith.constant 0 : index
    %130 = vector.load %arg7[%c4_36, %c0_37, %c0_38] : memref<8x16x32xf32, #tpu.memory_space<vmem>>, vector<1x16x32xf32>
    %131 = vector.shape_cast %130 : vector<1x16x32xf32> to vector<16x32xf32>
    %132 = vector.shape_cast %129 : vector<16x32xf32> to vector<1x16x32xf32>
    tpu.vector_store %arg7[%c4_36, %c0_37, %c0_38], %132 {strides = array<i32>} : memref<8x16x32xf32, #tpu.memory_space<vmem>>, vector<1x16x32xf32>,
    %c5 = arith.constant 5 : index
    %c0_39 = arith.constant 0 : index
    %c0_40 = arith.constant 0 : index
    %133 = vector.load %arg1[%c5, %c0_39, %c0_40] : memref<8x16x96xf32, #tpu.memory_space<vmem>>, vector<1x16x96xf32>
    %134 = vector.shape_cast %133 : vector<1x16x96xf32> to vector<16x96xf32>
    %cst_41 = arith.constant dense<0.000000e+00> : vector<16x96xf32>
    %135 = tpu.matmul %129, %0, %cst_41 {dimension_numbers = #tpu.dot_dimension_numbers<[1], [0], [0], [1], [0, 0, 1, 1], [], []>} : vector<16x32xf32>, vector<32x96xf32>, vector<16x96xf32> -> vector<16x96xf32>
    %136 = vector.extract_strided_slice %134 {offsets = [0, 0], sizes = [16, 64], strides = [1, 1]} : vector<16x96xf32> to vector<16x64xf32>
    %137 = vector.extract_strided_slice %135 {offsets = [0, 0], sizes = [16, 64], strides = [1, 1]} : vector<16x96xf32> to vector<16x64xf32>
    %138 = arith.addf %136, %137 : vector<16x64xf32>
    %139 = arith.negf %138 : vector<16x64xf32>
    %140 = math.exp %139 : vector<16x64xf32>
    %cst_42 = arith.constant 1.000000e+00 : f32
    %141 = vector.broadcast %cst_42 : f32 to vector<16x64xf32>
    %142 = arith.addf %141, %140 : vector<16x64xf32>
    %143 = arith.divf %141, %142 : vector<16x64xf32>
    %144 = vector.extract_strided_slice %143 {offsets = [0, 0], sizes = [16, 32], strides = [1, 1]} : vector<16x64xf32> to vector<16x32xf32>
    %145 = vector.extract_strided_slice %143 {offsets = [0, 32], sizes = [16, 32], strides = [1, 1]} : vector<16x64xf32> to vector<16x32xf32>
    %146 = vector.extract_strided_slice %134 {offsets = [0, 64], sizes = [16, 32], strides = [1, 1]} : vector<16x96xf32> to vector<16x32xf32>
    %147 = vector.extract_strided_slice %135 {offsets = [0, 64], sizes = [16, 32], strides = [1, 1]} : vector<16x96xf32> to vector<16x32xf32>
    %148 = vector.broadcast %1 : vector<1x32xf32> to vector<16x32xf32>
    %149 = arith.addf %147, %148 : vector<16x32xf32>
    %150 = arith.mulf %144, %149 : vector<16x32xf32>
    %151 = arith.addf %146, %150 : vector<16x32xf32>
    %152 = math.tanh %151 : vector<16x32xf32>
    %153 = arith.subf %129, %152 : vector<16x32xf32>
    %154 = arith.mulf %145, %153 : vector<16x32xf32>
    %155 = arith.addf %152, %154 : vector<16x32xf32>
    %c5_43 = arith.constant 5 : index
    %c0_44 = arith.constant 0 : index
    %c0_45 = arith.constant 0 : index
    %156 = vector.load %arg7[%c5_43, %c0_44, %c0_45] : memref<8x16x32xf32, #tpu.memory_space<vmem>>, vector<1x16x32xf32>
    %157 = vector.shape_cast %156 : vector<1x16x32xf32> to vector<16x32xf32>
    %158 = vector.shape_cast %155 : vector<16x32xf32> to vector<1x16x32xf32>
    tpu.vector_store %arg7[%c5_43, %c0_44, %c0_45], %158 {strides = array<i32>} : memref<8x16x32xf32, #tpu.memory_space<vmem>>, vector<1x16x32xf32>,
    %c6 = arith.constant 6 : index
    %c0_46 = arith.constant 0 : index
    %c0_47 = arith.constant 0 : index
    %159 = vector.load %arg1[%c6, %c0_46, %c0_47] : memref<8x16x96xf32, #tpu.memory_space<vmem>>, vector<1x16x96xf32>
    %160 = vector.shape_cast %159 : vector<1x16x96xf32> to vector<16x96xf32>
    %cst_48 = arith.constant dense<0.000000e+00> : vector<16x96xf32>
    %161 = tpu.matmul %155, %0, %cst_48 {dimension_numbers = #tpu.dot_dimension_numbers<[1], [0], [0], [1], [0, 0, 1, 1], [], []>} : vector<16x32xf32>, vector<32x96xf32>, vector<16x96xf32> -> vector<16x96xf32>
    %162 = vector.extract_strided_slice %160 {offsets = [0, 0], sizes = [16, 64], strides = [1, 1]} : vector<16x96xf32> to vector<16x64xf32>
    %163 = vector.extract_strided_slice %161 {offsets = [0, 0], sizes = [16, 64], strides = [1, 1]} : vector<16x96xf32> to vector<16x64xf32>
    %164 = arith.addf %162, %163 : vector<16x64xf32>
    %165 = arith.negf %164 : vector<16x64xf32>
    %166 = math.exp %165 : vector<16x64xf32>
    %cst_49 = arith.constant 1.000000e+00 : f32
    %167 = vector.broadcast %cst_49 : f32 to vector<16x64xf32>
    %168 = arith.addf %167, %166 : vector<16x64xf32>
    %169 = arith.divf %167, %168 : vector<16x64xf32>
    %170 = vector.extract_strided_slice %169 {offsets = [0, 0], sizes = [16, 32], strides = [1, 1]} : vector<16x64xf32> to vector<16x32xf32>
    %171 = vector.extract_strided_slice %169 {offsets = [0, 32], sizes = [16, 32], strides = [1, 1]} : vector<16x64xf32> to vector<16x32xf32>
    %172 = vector.extract_strided_slice %160 {offsets = [0, 64], sizes = [16, 32], strides = [1, 1]} : vector<16x96xf32> to vector<16x32xf32>
    %173 = vector.extract_strided_slice %161 {offsets = [0, 64], sizes = [16, 32], strides = [1, 1]} : vector<16x96xf32> to vector<16x32xf32>
    %174 = vector.broadcast %1 : vector<1x32xf32> to vector<16x32xf32>
    %175 = arith.addf %173, %174 : vector<16x32xf32>
    %176 = arith.mulf %170, %175 : vector<16x32xf32>
    %177 = arith.addf %172, %176 : vector<16x32xf32>
    %178 = math.tanh %177 : vector<16x32xf32>
    %179 = arith.subf %155, %178 : vector<16x32xf32>
    %180 = arith.mulf %171, %179 : vector<16x32xf32>
    %181 = arith.addf %178, %180 : vector<16x32xf32>
    %c6_50 = arith.constant 6 : index
    %c0_51 = arith.constant 0 : index
    %c0_52 = arith.constant 0 : index
    %182 = vector.load %arg7[%c6_50, %c0_51, %c0_52] : memref<8x16x32xf32, #tpu.memory_space<vmem>>, vector<1x16x32xf32>
    %183 = vector.shape_cast %182 : vector<1x16x32xf32> to vector<16x32xf32>
    %184 = vector.shape_cast %181 : vector<16x32xf32> to vector<1x16x32xf32>
    tpu.vector_store %arg7[%c6_50, %c0_51, %c0_52], %184 {strides = array<i32>} : memref<8x16x32xf32, #tpu.memory_space<vmem>>, vector<1x16x32xf32>,
    %c7 = arith.constant 7 : index
    %c0_53 = arith.constant 0 : index
    %c0_54 = arith.constant 0 : index
    %185 = vector.load %arg1[%c7, %c0_53, %c0_54] : memref<8x16x96xf32, #tpu.memory_space<vmem>>, vector<1x16x96xf32>
    %186 = vector.shape_cast %185 : vector<1x16x96xf32> to vector<16x96xf32>
    %cst_55 = arith.constant dense<0.000000e+00> : vector<16x96xf32>
    %187 = tpu.matmul %181, %0, %cst_55 {dimension_numbers = #tpu.dot_dimension_numbers<[1], [0], [0], [1], [0, 0, 1, 1], [], []>} : vector<16x32xf32>, vector<32x96xf32>, vector<16x96xf32> -> vector<16x96xf32>
    %188 = vector.extract_strided_slice %186 {offsets = [0, 0], sizes = [16, 64], strides = [1, 1]} : vector<16x96xf32> to vector<16x64xf32>
    %189 = vector.extract_strided_slice %187 {offsets = [0, 0], sizes = [16, 64], strides = [1, 1]} : vector<16x96xf32> to vector<16x64xf32>
    %190 = arith.addf %188, %189 : vector<16x64xf32>
    %191 = arith.negf %190 : vector<16x64xf32>
    %192 = math.exp %191 : vector<16x64xf32>
    %cst_56 = arith.constant 1.000000e+00 : f32
    %193 = vector.broadcast %cst_56 : f32 to vector<16x64xf32>
    %194 = arith.addf %193, %192 : vector<16x64xf32>
    %195 = arith.divf %193, %194 : vector<16x64xf32>
    %196 = vector.extract_strided_slice %195 {offsets = [0, 0], sizes = [16, 32], strides = [1, 1]} : vector<16x64xf32> to vector<16x32xf32>
    %197 = vector.extract_strided_slice %195 {offsets = [0, 32], sizes = [16, 32], strides = [1, 1]} : vector<16x64xf32> to vector<16x32xf32>
    %198 = vector.extract_strided_slice %186 {offsets = [0, 64], sizes = [16, 32], strides = [1, 1]} : vector<16x96xf32> to vector<16x32xf32>
    %199 = vector.extract_strided_slice %187 {offsets = [0, 64], sizes = [16, 32], strides = [1, 1]} : vector<16x96xf32> to vector<16x32xf32>
    %200 = vector.broadcast %1 : vector<1x32xf32> to vector<16x32xf32>
    %201 = arith.addf %199, %200 : vector<16x32xf32>
    %202 = arith.mulf %196, %201 : vector<16x32xf32>
    %203 = arith.addf %198, %202 : vector<16x32xf32>
    %204 = math.tanh %203 : vector<16x32xf32>
    %205 = arith.subf %181, %204 : vector<16x32xf32>
    %206 = arith.mulf %197, %205 : vector<16x32xf32>
    %207 = arith.addf %204, %206 : vector<16x32xf32>
    %c7_57 = arith.constant 7 : index
    %c0_58 = arith.constant 0 : index
    %c0_59 = arith.constant 0 : index
    %208 = vector.load %arg7[%c7_57, %c0_58, %c0_59] : memref<8x16x32xf32, #tpu.memory_space<vmem>>, vector<1x16x32xf32>
    %209 = vector.shape_cast %208 : vector<1x16x32xf32> to vector<16x32xf32>
    %210 = vector.shape_cast %207 : vector<16x32xf32> to vector<1x16x32xf32>
    tpu.vector_store %arg7[%c7_57, %c0_58, %c0_59], %210 {strides = array<i32>} : memref<8x16x32xf32, #tpu.memory_space<vmem>>, vector<1x16x32xf32>,
    %c0_60 = arith.constant 0 : index
    %c0_61 = arith.constant 0 : index
    %c0_62 = arith.constant 0 : index
    %211 = vector.load %arg7[%c0_60, %c0_61, %c0_62] : memref<8x16x32xf32, #tpu.memory_space<vmem>>, vector<8x16x32xf32>
    %212 = vector.shape_cast %211 : vector<8x16x32xf32> to vector<8x512xf32>
    %c0_63 = arith.constant 0 : index
    %c0_64 = arith.constant 0 : index
    %213 = vector.load %arg4[%c0_63, %c0_64] : memref<8x8xf32, #tpu.memory_space<vmem>>, vector<8x8xf32>
    %cst_65 = arith.constant dense<0.000000e+00> : vector<8x512xf32>
    %214 = tpu.matmul %213, %212, %cst_65 {dimension_numbers = #tpu.dot_dimension_numbers<[1], [0], [0], [1], [0, 0, 1, 1], [], []>} : vector<8x8xf32>, vector<8x512xf32>, vector<8x512xf32> -> vector<8x512xf32>
    %c0_66 = arith.constant 0 : index
    %c0_67 = arith.constant 0 : index
    %215 = vector.load %arg5[%c0_66, %c0_67] : memref<8x1xf32, #tpu.memory_space<vmem>>, vector<8x1xf32>
    %216 = vector.broadcast %215 : vector<8x1xf32> to vector<8x512xf32>
    %217 = arith.addf %214, %216 : vector<8x512xf32>
    %cst_68 = arith.constant dense<0xFF800000> : vector<512xf32>
    %218 = vector.multi_reduction <maximumf>, %217, %cst_68 [0] : vector<8x512xf32> to vector<512xf32>
    %219 = vector.shape_cast %218 : vector<512xf32> to vector<1x512xf32>
    %220 = vector.broadcast %219 : vector<1x512xf32> to vector<8x512xf32>
    %221 = arith.subf %217, %220 : vector<8x512xf32>
    %222 = math.exp %221 : vector<8x512xf32>
    %cst_69 = arith.constant dense<0.000000e+00> : vector<512xf32>
    %223 = vector.multi_reduction <add>, %222, %cst_69 [0] : vector<8x512xf32> to vector<512xf32>
    %224 = vector.shape_cast %223 : vector<512xf32> to vector<1x512xf32>
    %225 = tpu.reciprocal %224 : vector<1x512xf32> -> vector<1x512xf32>
    %226 = vector.broadcast %225 : vector<1x512xf32> to vector<8x512xf32>
    %227 = arith.mulf %222, %226 : vector<8x512xf32>
    %228 = arith.mulf %212, %227 : vector<8x512xf32>
    %c0_70 = arith.constant 0 : index
    %c0_71 = arith.constant 0 : index
    %229 = vector.load %arg6[%c0_70, %c0_71] : memref<8x512xf32, #tpu.memory_space<vmem>>, vector<8x512xf32>
    tpu.vector_store %arg6[%c0_70, %c0_71], %228 {strides = array<i32>} : memref<8x512xf32, #tpu.memory_space<vmem>>, vector<8x512xf32>,
    return
  }
  func.func @transform_0(%arg0: i32) -> (i32, i32, i32) {
    %c0_i32 = arith.constant 0 : i32
    %c0_i32_0 = arith.constant 0 : i32
    %c0_i32_1 = arith.constant 0 : i32
    return %c0_i32, %arg0, %c0_i32_0 : i32, i32, i32
  }
  func.func @transform_1(%arg0: i32) -> (i32, i32) {
    %c0_i32 = arith.constant 0 : i32
    %c0_i32_0 = arith.constant 0 : i32
    %c0_i32_1 = arith.constant 0 : i32
    return %c0_i32, %c0_i32_0 : i32, i32
  }
  func.func @transform_2(%arg0: i32) -> (i32, i32) {
    %c0_i32 = arith.constant 0 : i32
    %c0_i32_0 = arith.constant 0 : i32
    %c0_i32_1 = arith.constant 0 : i32
    return %c0_i32, %c0_i32_0 : i32, i32
  }
  func.func @transform_3(%arg0: i32) -> (i32, i32) {
    %c0_i32 = arith.constant 0 : i32
    %c0_i32_0 = arith.constant 0 : i32
    %c0_i32_1 = arith.constant 0 : i32
    return %c0_i32, %c0_i32_0 : i32, i32
  }
  func.func @transform_4(%arg0: i32) -> (i32, i32) {
    %c0_i32 = arith.constant 0 : i32
    %c0_i32_0 = arith.constant 0 : i32
    %c0_i32_1 = arith.constant 0 : i32
    return %c0_i32, %c0_i32_0 : i32, i32
  }
  func.func @transform_5(%arg0: i32) -> (i32, i32) {
    %c0_i32 = arith.constant 0 : i32
    %c0_i32_0 = arith.constant 0 : i32
    return %c0_i32, %arg0 : i32, i32
  }
}

</mosaic_0001>

<llo_original>
// kernel: tpu_custom_call.1
$region0: #{tpu_custom_call.1}
  #allocation0 [shape = 'u32[]', space=smem, size = 0x4, offset = 0x4, fixed_abs, tag = 'smem constant byte address 0x4 - core index']
  #allocation1 [shape = 'u32[144,128]{1,0:T(1,128)}', space=vmem, size = 0x12000, scoped, tag = 'internal scratch']
  #allocation2 [shape = 'f32[8,16,32]{2,1,0:T(8,128)}', space=vmem, size = 0x10000, scoped, tag = 'scratch operand']
  %s0 = inlined_call_operand.hbm [shape: f32[8,16,96], index: 0, kind: input, shape index: {}]
  %s1 = inlined_call_operand.hbm [shape: f32[32,96], index: 1, kind: input, shape index: {}]
  %s2 = inlined_call_operand.vmem [shape: f32[1,32], index: 2, kind: input, shape index: {}]
  %s3 = inlined_call_operand.vmem [shape: f32[8,8], index: 3, kind: input, shape index: {}]
  %s4 = inlined_call_operand.vmem [shape: f32[8,1], index: 4, kind: input, shape index: {}]
  %s5 = inlined_call_operand.hbm [shape: f32[8,512], index: 5, kind: output, shape index: {}]
  %s6 = sld [smem:[#allocation0]]
  $region38: #{tpu_custom_call.1} parent=0
    _
  %s8 = ssub.s32 1, %s6
  %s9 = scalar_select 0, %s8, %s6
  $region1: #{tpu_custom_call.1} parent=0
    #allocation3 [shape = 'u8[65536]{0}', space=vmem, size = 0x10000, scoped, tag = 'input window, operand 0, single buffered']
    #allocation4 [shape = 's32[1]{0}', space=sflag, size = 0x4, scoped, tag = 'scoped memory for tpu_custom_call.1']
    #allocation5 [shape = 's32[1]{0}', space=sflag, size = 0x4, scoped, tag = 'scoped memory for tpu_custom_call.1']
    #allocation6 [shape = 'u8[16384]{0}', space=vmem, size = 0x4000, scoped, tag = 'input window, operand 1, single buffered']
    #allocation7 [shape = 's32[1]{0}', space=sflag, size = 0x4, scoped, tag = 'scoped memory for tpu_custom_call.1']
    #allocation8 [shape = 'u8[16384]{0}', space=vmem, size = 0x4000, scoped, tag = 'output window, operand 0, single buffered']
    %10 = vsyncpa [#allocation4], 0
    %11 = vsyncpa [#allocation7], 0
    %12 = vsyncpa [#allocation5], 0
    // Predicated region
    $region2: #{tpu_custom_call.1} parent=1 // pred_check
      _
    $region3: #{tpu_custom_call.1} parent=1 // pred_check_branch
      %14 = sbr.rel (0) target = $region5
    $region4: #{tpu_custom_call.1} parent=1 // pred_region
      %s16 = ssub.s32 2048, 2048
      %17 = vsyncadd [#allocation4], %s16
      %s18 = sshll.u32 [#allocation3], 4
      %s19 = int_to_ptr.vmem [resolvable:$true] %s18
      %24 = dma.hbm_to_vmem [thread:$0]  %s0, 2048, %s19, [#allocation4], 128, 128, 8
    $region5: #{tpu_custom_call.1} parent=1 // pred_fallthru
      _
    // Predicated region
    $region6: #{tpu_custom_call.1} parent=1 // pred_check
      _
    $region7: #{tpu_custom_call.1} parent=1 // pred_check_branch
      %26 = sbr.rel (0) target = $region9
    $region8: #{tpu_custom_call.1} parent=1 // pred_region
      %s28 = ssub.s32 512, 512
      %29 = vsyncadd [#allocation7], %s28
      %s30 = sshll.u32 [#allocation6], 4
      %s31 = int_to_ptr.vmem [resolvable:$true] %s30
      %36 = dma.hbm_to_vmem [thread:$0]  %s1, 512, %s31, [#allocation7], 128, 128, 8
    $region9: #{tpu_custom_call.1} parent=1 // pred_fallthru
      _
    // Predicated region
    $region10: #{tpu_custom_call.1} parent=1 // pred_check
      _
    $region11: #{tpu_custom_call.1} parent=1 // pred_check_branch
      %38 = sbr.rel (0) target = $region13
    $region12: #{tpu_custom_call.1} parent=1 // pred_region
      _
    $region13: #{tpu_custom_call.1} parent=1 // pred_fallthru
      _
    // Predicated region
    $region14: #{tpu_custom_call.1} parent=1 // pred_check
      _
    $region15: #{tpu_custom_call.1} parent=1 // pred_check_branch
      %40 = sbr.rel (0) target = $region17
    $region16: #{tpu_custom_call.1} parent=1 // pred_region
      _
    $region17: #{tpu_custom_call.1} parent=1 // pred_fallthru
      _
    // Predicated region
    $region18: #{tpu_custom_call.1} parent=1 // pred_check
      _
    $region19: #{tpu_custom_call.1} parent=1 // pred_check_branch
      %42 = sbr.rel (0) target = $region21
    $region20: #{tpu_custom_call.1} parent=1 // pred_region
      _
    $region21: #{tpu_custom_call.1} parent=1 // pred_fallthru
      _
    // Predicated region
    $region22: #{tpu_custom_call.1} parent=1 // pred_check
      _
    $region23: #{tpu_custom_call.1} parent=1 // pred_check_branch
      %44 = sbr.rel (0) target = $region25
    $region24: #{tpu_custom_call.1} parent=1 // pred_region
      %45 = dma.done [#allocation4], 2048
    $region25: #{tpu_custom_call.1} parent=1 // pred_fallthru
      _
    // Predicated region
    $region26: #{tpu_custom_call.1} parent=1 // pred_check
      _
    $region27: #{tpu_custom_call.1} parent=1 // pred_check_branch
      %47 = sbr.rel (0) target = $region29
    $region28: #{tpu_custom_call.1} parent=1 // pred_region
      %48 = dma.done [#allocation7], 512
    $region29: #{tpu_custom_call.1} parent=1 // pred_fallthru
      _
    %v49 = vld [vmem:[#allocation6] sm:$0xff]
    %v50 = vld [vmem:[#allocation6 + $0x8] sm:$0xff]
    %v51 = vld [vmem:[#allocation6 + $0x10] sm:$0xff]
    %v52 = vld [vmem:[#allocation6 + $0x18] sm:$0xff]
    %v53 = vld [vmem:[%s2] sm:$0x1]
    %v54 = vld [vmem:[#allocation3] sm:$0xff]
    %v55 = vld [vmem:[#allocation3 + $0x8] sm:$0xff]
    %vm56 = vcmask 261120
    %v58 = vsel %vm56, 0.0, 0
    %60 = vmatprep.subr.mxu0 0.0
    %61 = vmatpush1.msra.mxu0 0.0
    %62 = vmatprep.subr.mxu0 0.0
    %63 = vmatpush1.msra.mxu0 0.0
    %64 = vmatprep.subr.mxu0 0.0
    %65 = vmatpush1.msra.mxu0 0.0
    %66 = vmatprep.subr.mxu0 0.0
    %67 = vmatpush1.msra.mxu0 0.0
    %68 = vmatprep.subr.mxu0 0.0
    %69 = vmatpush1.msra.mxu0 0.0
    %70 = vmatprep.subr.mxu0 0.0
    %71 = vmatpush1.msra.mxu0 0.0
    %72 = vmatprep.subr.mxu0 0.0
    %73 = vmatpush1.msra.mxu0 0.0
    %74 = vmatprep.subr.mxu0 0.0
    %75 = vmatpush1.msra.mxu0 0.0
    %76 = vmatprep.subr.mxu0 0.0
    %77 = vmatpush1.msra.mxu0 0.0
    %78 = vmatprep.subr.mxu0 0.0
    %79 = vmatpush1.msra.mxu0 0.0
    %80 = vmatprep.subr.mxu0 0.0
    %81 = vmatpush1.msra.mxu0 0.0
    %82 = vmatprep.subr.mxu0 0.0
    %83 = vmatpush1.msra.mxu0 0.0
    %84 = vmatprep.subr.mxu0 0.0
    %85 = vmatpush1.msra.mxu0 %v52
    %86 = vmatprep.subr.mxu0 0.0
    %87 = vmatpush1.msra.mxu0 %v51
    %88 = vmatprep.subr.mxu0 0.0
    %89 = vmatpush1.msra.mxu0 %v50
    %90 = vmatprep.subr.mxu0 0.0
    %91 = vmatpush1.msra.mxu0 %v49
    %92 = vmatprep.subr.mxu0 0.0
    %93 = vmatpush2.msra.mxu0 0.0
    %94 = vmatprep.subr.mxu0 0.0
    %95 = vmatpush2.msra.mxu0 0.0
    %96 = vmatprep.subr.mxu0 0.0
    %97 = vmatpush2.msra.mxu0 0.0
    %98 = vmatprep.subr.mxu0 0.0
    %99 = vmatpush2.msra.mxu0 0.0
    %100 = vmatprep.subr.mxu0 0.0
    %101 = vmatpush2.msra.mxu0 0.0
    %102 = vmatprep.subr.mxu0 0.0
    %103 = vmatpush2.msra.mxu0 0.0
    %104 = vmatprep.subr.mxu0 0.0
    %105 = vmatpush2.msra.mxu0 0.0
    %106 = vmatprep.subr.mxu0 0.0
    %107 = vmatpush2.msra.mxu0 0.0
    %108 = vmatprep.subr.mxu0 0.0
    %109 = vmatpush2.msra.mxu0 0.0
    %110 = vmatprep.subr.mxu0 0.0
    %111 = vmatpush2.msra.mxu0 0.0
    %112 = vmatprep.subr.mxu0 0.0
    %113 = vmatpush2.msra.mxu0 0.0
    %114 = vmatprep.subr.mxu0 0.0
    %115 = vmatpush2.msra.mxu0 0.0
    %116 = vmatprep.subr.mxu0 0.0
    %117 = vmatpush2.msra.mxu0 0.0
    %118 = vmatprep.subr.mxu0 0.0
    %119 = vmatpush2.msra.mxu0 0.0
    %120 = vmatprep.subr.mxu0 0.0
    %121 = vmatpush2.msra.mxu0 0.0
    %122 = vmatprep.subr.mxu0 0.0
    %123 = vmatpush2.msra.mxu0 0.0
    %124 = vmatprep.mubr.f32.mxu0 0.0
    %125 = vmatmul.mubr.f32.gmra.mxu0 %v58
    %v126 = vpop.f32.mrf.mxu0
    %v127 = vadd.f32 0.0, %v126
    %v128 = vpop.f32.mrf.mxu0
    %129 = vmatprep.mubr.f32.mxu0 0.0
    %130 = vmatmul.mubr.f32.gmra.mxu0 %v58
    %v131 = vpop.f32.mrf.mxu0
    %v132 = vadd.f32 0.0, %v131
    %v133 = vpop.f32.mrf.mxu0
    %134 = vdwg.mxu0
    %v135 = vadd.f32 %v54, %v127
    %v136 = vadd.f32 %v55, %v132
    %v137 = vxor.u32 %v135, 2147483648
    %v138 = vxor.u32 %v136, 2147483648
    %v139 = vmul.f32 %v137, 1.442695
    %v140 = vpow.pop %v139
    %v141 = vmul.f32 %v138, 1.442695
    %v142 = vpow.pop %v141
    %v143 = vadd.f32 %v140, 1.0
    %v144 = vadd.f32 %v142, 1.0
    %v145 = vrcp.pop %v143
    %v146 = vmul.f32 1.0, %v145
    %v147 = vrcp.pop %v144
    %v148 = vmul.f32 1.0, %v147
    %v150 = vlaneseq
    %v151 = vshrl.u32 %v150, 7
    %v152 = vsub.s32 0, %v151
    %v153 = vrot.slane %v53, %v152
    %154 = vrot.lane.b32.xlu0 %v153, 64
    %v155 = vpop.permute.xlu0 %154
    %v157 = vadd.f32 %v127, %v155
    %v158 = vadd.f32 %v132, %v155
    %161 = vrot.lane.b32.xlu0 %v157, 64
    %v162 = vpop.permute.xlu0 %161
    %163 = vrot.lane.b32.xlu0 %v158, 64
    %v164 = vpop.permute.xlu0 %163
    %v167 = vmul.f32 %v146, %v162
    %v168 = vmul.f32 %v148, %v164
    %171 = vrot.lane.b32.xlu0 %v167, 64
    %v172 = vpop.permute.xlu0 %171
    %173 = vrot.lane.b32.xlu0 %v168, 64
    %v174 = vpop.permute.xlu0 %173
    %v177 = vadd.f32 %v54, %v172
    %v178 = vadd.f32 %v55, %v174
    %v179 = vtanh.pop %v177
    %v180 = vtanh.pop %v178
    %v181 = vsub.f32 0.0, %v179
    %v182 = vsub.f32 0.0, %v180
    %185 = vrot.lane.b32.xlu0 %v181, 96
    %v186 = vpop.permute.xlu0 %185
    %187 = vrot.lane.b32.xlu0 %v182, 96
    %v188 = vpop.permute.xlu0 %187
    %v191 = vmul.f32 %v146, %v186
    %v192 = vmul.f32 %v148, %v188
    %195 = vrot.lane.b32.xlu0 %v191, 32
    %v196 = vpop.permute.xlu0 %195
    %197 = vrot.lane.b32.xlu0 %v192, 32
    %v198 = vpop.permute.xlu0 %197
    %v201 = vadd.f32 %v179, %v196
    %v202 = vadd.f32 %v180, %v198
    %205 = vrot.lane.b32.xlu0 %v201, 64
    %v206 = vpop.permute.xlu0 %205
    %207 = vrot.lane.b32.xlu0 %v202, 64
    %v208 = vpop.permute.xlu0 %207
    %211 = vst.msk [vmem:[#allocation2] sm:$0xff] %vm56, %v206
    %212 = vst.msk [vmem:[#allocation2 + $0x8] sm:$0xff] %vm56, %v208
    %s213 = scalar_lea.vmem [#allocation3], 16
    %v214 = vld [vmem:[%s213] sm:$0xff]
    %v215 = vld [vmem:[%s213 + $0x8] sm:$0xff]
    %v216 = vsel %vm56, %v206, 0
    %v218 = vsel %vm56, %v208, 0
    %220 = vmatprep.subr.mxu0 0.0
    %221 = vmatpush1.msra.mxu0 0.0
    %222 = vmatprep.subr.mxu0 0.0
    %223 = vmatpush1.msra.mxu0 0.0
    %224 = vmatprep.subr.mxu0 0.0
    %225 = vmatpush1.msra.mxu0 0.0
    %226 = vmatprep.subr.mxu0 0.0
    %227 = vmatpush1.msra.mxu0 0.0
    %228 = vmatprep.subr.mxu0 0.0
    %229 = vmatpush1.msra.mxu0 0.0
    %230 = vmatprep.subr.mxu0 0.0
    %231 = vmatpush1.msra.mxu0 0.0
    %232 = vmatprep.subr.mxu0 0.0
    %233 = vmatpush1.msra.mxu0 0.0
    %234 = vmatprep.subr.mxu0 0.0
    %235 = vmatpush1.msra.mxu0 0.0
    %236 = vmatprep.subr.mxu0 0.0
    %237 = vmatpush1.msra.mxu0 0.0
    %238 = vmatprep.subr.mxu0 0.0
    %239 = vmatpush1.msra.mxu0 0.0
    %240 = vmatprep.subr.mxu0 0.0
    %241 = vmatpush1.msra.mxu0 0.0
    %242 = vmatprep.subr.mxu0 0.0
    %243 = vmatpush1.msra.mxu0 0.0
    %244 = vmatprep.subr.mxu0 0.0
    %245 = vmatpush1.msra.mxu0 %v52
    %246 = vmatprep.subr.mxu0 0.0
    %247 = vmatpush1.msra.mxu0 %v51
    %248 = vmatprep.subr.mxu0 0.0
    %249 = vmatpush1.msra.mxu0 %v50
    %250 = vmatprep.subr.mxu0 0.0
    %251 = vmatpush1.msra.mxu0 %v49
    %252 = vmatprep.subr.mxu0 0.0
    %253 = vmatpush2.msra.mxu0 0.0
    %254 = vmatprep.subr.mxu0 0.0
    %255 = vmatpush2.msra.mxu0 0.0
    %256 = vmatprep.subr.mxu0 0.0
    %257 = vmatpush2.msra.mxu0 0.0
    %258 = vmatprep.subr.mxu0 0.0
    %259 = vmatpush2.msra.mxu0 0.0
    %260 = vmatprep.subr.mxu0 0.0
    %261 = vmatpush2.msra.mxu0 0.0
    %262 = vmatprep.subr.mxu0 0.0
    %263 = vmatpush2.msra.mxu0 0.0
    %264 = vmatprep.subr.mxu0 0.0
    %265 = vmatpush2.msra.mxu0 0.0
    %266 = vmatprep.subr.mxu0 0.0
    %267 = vmatpush2.msra.mxu0 0.0
    %268 = vmatprep.subr.mxu0 0.0
    %269 = vmatpush2.msra.mxu0 0.0
    %270 = vmatprep.subr.mxu0 0.0
    %271 = vmatpush2.msra.mxu0 0.0
    %272 = vmatprep.subr.mxu0 0.0
    %273 = vmatpush2.msra.mxu0 0.0
    %274 = vmatprep.subr.mxu0 0.0
    %275 = vmatpush2.msra.mxu0 0.0
    %276 = vmatprep.subr.mxu0 0.0
    %277 = vmatpush2.msra.mxu0 0.0
    %278 = vmatprep.subr.mxu0 0.0
    %279 = vmatpush2.msra.mxu0 0.0
    %280 = vmatprep.subr.mxu0 0.0
    %281 = vmatpush2.msra.mxu0 0.0
    %282 = vmatprep.subr.mxu0 0.0
    %283 = vmatpush2.msra.mxu0 0.0
    %284 = vmatprep.mubr.f32.mxu0 0.0
    %285 = vmatmul.mubr.f32.gmra.mxu0 %v216
    %v286 = vpop.f32.mrf.mxu0
    %v287 = vadd.f32 0.0, %v286
    %v288 = vpop.f32.mrf.mxu0
    %289 = vmatprep.mubr.f32.mxu0 0.0
    %290 = vmatmul.mubr.f32.gmra.mxu0 %v218
    %v291 = vpop.f32.mrf.mxu0
    %v292 = vadd.f32 0.0, %v291
    %v293 = vpop.f32.mrf.mxu0
    %294 = vdwg.mxu0
    %v295 = vadd.f32 %v214, %v287
    %v296 = vadd.f32 %v215, %v292
    %v297 = vxor.u32 %v295, 2147483648
    %v298 = vxor.u32 %v296, 2147483648
    %v299 = vmul.f32 %v297, 1.442695
    %v300 = vpow.pop %v299
    %v301 = vmul.f32 %v298, 1.442695
    %v302 = vpow.pop %v301
    %v303 = vadd.f32 %v300, 1.0
    %v304 = vadd.f32 %v302, 1.0
    %v305 = vrcp.pop %v303
    %v306 = vmul.f32 1.0, %v305
    %v307 = vrcp.pop %v304
    %v308 = vmul.f32 1.0, %v307
    %v309 = vadd.f32 %v287, %v155
    %v310 = vadd.f32 %v292, %v155
    %313 = vrot.lane.b32.xlu0 %v309, 64
    %v314 = vpop.permute.xlu0 %313
    %315 = vrot.lane.b32.xlu0 %v310, 64
    %v316 = vpop.permute.xlu0 %315
    %v319 = vmul.f32 %v306, %v314
    %v320 = vmul.f32 %v308, %v316
    %323 = vrot.lane.b32.xlu0 %v319, 64
    %v324 = vpop.permute.xlu0 %323
    %325 = vrot.lane.b32.xlu0 %v320, 64
    %v326 = vpop.permute.xlu0 %325
    %v329 = vadd.f32 %v214, %v324
    %v330 = vadd.f32 %v215, %v326
    %v331 = vtanh.pop %v329
    %v332 = vtanh.pop %v330
    %v333 = vsub.f32 %v201, %v331
    %v334 = vsub.f32 %v202, %v332
    %337 = vrot.lane.b32.xlu0 %v333, 96
    %v338 = vpop.permute.xlu0 %337
    %339 = vrot.lane.b32.xlu0 %v334, 96
    %v340 = vpop.permute.xlu0 %339
    %v343 = vmul.f32 %v306, %v338
    %v344 = vmul.f32 %v308, %v340
    %347 = vrot.lane.b32.xlu0 %v343, 32
    %v348 = vpop.permute.xlu0 %347
    %349 = vrot.lane.b32.xlu0 %v344, 32
    %v350 = vpop.permute.xlu0 %349
    %v353 = vadd.f32 %v331, %v348
    %v354 = vadd.f32 %v332, %v350
    %357 = vrot.lane.b32.xlu0 %v353, 64
    %v358 = vpop.permute.xlu0 %357
    %359 = vrot.lane.b32.xlu0 %v354, 64
    %v360 = vpop.permute.xlu0 %359
    %s363 = scalar_lea.vmem [#allocation2], 16
    %364 = vst.msk [vmem:[%s363] sm:$0xff] %vm56, %v358
    %365 = vst.msk [vmem:[%s363 + $0x8] sm:$0xff] %vm56, %v360
    %s366 = scalar_lea.vmem [#allocation3], 32
    %v367 = vld [vmem:[%s366] sm:$0xff]
    %v368 = vld [vmem:[%s366 + $0x8] sm:$0xff]
    %v369 = vsel %vm56, %v358, 0
    %v371 = vsel %vm56, %v360, 0
    %373 = vmatprep.subr.mxu0 0.0
    %374 = vmatpush1.msra.mxu0 0.0
    %375 = vmatprep.subr.mxu0 0.0
    %376 = vmatpush1.msra.mxu0 0.0
    %377 = vmatprep.subr.mxu0 0.0
    %378 = vmatpush1.msra.mxu0 0.0
    %379 = vmatprep.subr.mxu0 0.0
    %380 = vmatpush1.msra.mxu0 0.0
    %381 = vmatprep.subr.mxu0 0.0
    %382 = vmatpush1.msra.mxu0 0.0
    %383 = vmatprep.subr.mxu0 0.0
    %384 = vmatpush1.msra.mxu0 0.0
    %385 = vmatprep.subr.mxu0 0.0
    %386 = vmatpush1.msra.mxu0 0.0
    %387 = vmatprep.subr.mxu0 0.0
    %388 = vmatpush1.msra.mxu0 0.0
    %389 = vmatprep.subr.mxu0 0.0
    %390 = vmatpush1.msra.mxu0 0.0
    %391 = vmatprep.subr.mxu0 0.0
    %392 = vmatpush1.msra.mxu0 0.0
    %393 = vmatprep.subr.mxu0 0.0
    %394 = vmatpush1.msra.mxu0 0.0
    %395 = vmatprep.subr.mxu0 0.0
    %396 = vmatpush1.msra.mxu0 0.0
    %397 = vmatprep.subr.mxu0 0.0
    %398 = vmatpush1.msra.mxu0 %v52
    %399 = vmatprep.subr.mxu0 0.0
    %400 = vmatpush1.msra.mxu0 %v51
    %401 = vmatprep.subr.mxu0 0.0
    %402 = vmatpush1.msra.mxu0 %v50
    %403 = vmatprep.subr.mxu0 0.0
    %404 = vmatpush1.msra.mxu0 %v49
    %405 = vmatprep.subr.mxu0 0.0
    %406 = vmatpush2.msra.mxu0 0.0
    %407 = vmatprep.subr.mxu0 0.0
    %408 = vmatpush2.msra.mxu0 0.0
    %409 = vmatprep.subr.mxu0 0.0
    %410 = vmatpush2.msra.mxu0 0.0
    %411 = vmatprep.subr.mxu0 0.0
    %412 = vmatpush2.msra.mxu0 0.0
    %413 = vmatprep.subr.mxu0 0.0
    %414 = vmatpush2.msra.mxu0 0.0
    %415 = vmatprep.subr.mxu0 0.0
    %416 = vmatpush2.msra.mxu0 0.0
    %417 = vmatprep.subr.mxu0 0.0
    %418 = vmatpush2.msra.mxu0 0.0
    %419 = vmatprep.subr.mxu0 0.0
    %420 = vmatpush2.msra.mxu0 0.0
    %421 = vmatprep.subr.mxu0 0.0
    %422 = vmatpush2.msra.mxu0 0.0
    %423 = vmatprep.subr.mxu0 0.0
    %424 = vmatpush2.msra.mxu0 0.0
    %425 = vmatprep.subr.mxu0 0.0
    %426 = vmatpush2.msra.mxu0 0.0
    %427 = vmatprep.subr.mxu0 0.0
    %428 = vmatpush2.msra.mxu0 0.0
    %429 = vmatprep.subr.mxu0 0.0
    %430 = vmatpush2.msra.mxu0 0.0
    %431 = vmatprep.subr.mxu0 0.0
    %432 = vmatpush2.msra.mxu0 0.0
    %433 = vmatprep.subr.mxu0 0.0
    %434 = vmatpush2.msra.mxu0 0.0
    %435 = vmatprep.subr.mxu0 0.0
    %436 = vmatpush2.msra.mxu0 0.0
    %437 = vmatprep.mubr.f32.mxu0 0.0
    %438 = vmatmul.mubr.f32.gmra.mxu0 %v369
    %v439 = vpop.f32.mrf.mxu0
    %v440 = vadd.f32 0.0, %v439
    %v441 = vpop.f32.mrf.mxu0
    %442 = vmatprep.mubr.f32.mxu0 0.0
    %443 = vmatmul.mubr.f32.gmra.mxu0 %v371
    %v444 = vpop.f32.mrf.mxu0
    %v445 = vadd.f32 0.0, %v444
    %v446 = vpop.f32.mrf.mxu0
    %447 = vdwg.mxu0
    %v448 = vadd.f32 %v367, %v440
    %v449 = vadd.f32 %v368, %v445
    %v450 = vxor.u32 %v448, 2147483648
    %v451 = vxor.u32 %v449, 2147483648
    %v452 = vmul.f32 %v450, 1.442695
    %v453 = vpow.pop %v452
    %v454 = vmul.f32 %v451, 1.442695
    %v455 = vpow.pop %v454
    %v456 = vadd.f32 %v453, 1.0
    %v457 = vadd.f32 %v455, 1.0
    %v458 = vrcp.pop %v456
    %v459 = vmul.f32 1.0, %v458
    %v460 = vrcp.pop %v457
    %v461 = vmul.f32 1.0, %v460
    %v462 = vadd.f32 %v440, %v155
    %v463 = vadd.f32 %v445, %v155
    %466 = vrot.lane.b32.xlu0 %v462, 64
    %v467 = vpop.permute.xlu0 %466
    %468 = vrot.lane.b32.xlu0 %v463, 64
    %v469 = vpop.permute.xlu0 %468
    %v472 = vmul.f32 %v459, %v467
    %v473 = vmul.f32 %v461, %v469
    %476 = vrot.lane.b32.xlu0 %v472, 64
    %v477 = vpop.permute.xlu0 %476
    %478 = vrot.lane.b32.xlu0 %v473, 64
    %v479 = vpop.permute.xlu0 %478
    %v482 = vadd.f32 %v367, %v477
    %v483 = vadd.f32 %v368, %v479
    %v484 = vtanh.pop %v482
    %v485 = vtanh.pop %v483
    %v486 = vsub.f32 %v353, %v484
    %v487 = vsub.f32 %v354, %v485
    %490 = vrot.lane.b32.xlu0 %v486, 96
    %v491 = vpop.permute.xlu0 %490
    %492 = vrot.lane.b32.xlu0 %v487, 96
    %v493 = vpop.permute.xlu0 %492
    %v496 = vmul.f32 %v459, %v491
    %v497 = vmul.f32 %v461, %v493
    %500 = vrot.lane.b32.xlu0 %v496, 32
    %v501 = vpop.permute.xlu0 %500
    %502 = vrot.lane.b32.xlu0 %v497, 32
    %v503 = vpop.permute.xlu0 %502
    %v506 = vadd.f32 %v484, %v501
    %v507 = vadd.f32 %v485, %v503
    %510 = vrot.lane.b32.xlu0 %v506, 64
    %v511 = vpop.permute.xlu0 %510
    %512 = vrot.lane.b32.xlu0 %v507, 64
    %v513 = vpop.permute.xlu0 %512
    %s516 = scalar_lea.vmem [#allocation2], 32
    %517 = vst.msk [vmem:[%s516] sm:$0xff] %vm56, %v511
    %518 = vst.msk [vmem:[%s516 + $0x8] sm:$0xff] %vm56, %v513
    %s519 = scalar_lea.vmem [#allocation3], 48
    %v520 = vld [vmem:[%s519] sm:$0xff]
    %v521 = vld [vmem:[%s519 + $0x8] sm:$0xff]
    %v522 = vsel %vm56, %v511, 0
    %v524 = vsel %vm56, %v513, 0
    %526 = vmatprep.subr.mxu0 0.0
    %527 = vmatpush1.msra.mxu0 0.0
    %528 = vmatprep.subr.mxu0 0.0
    %529 = vmatpush1.msra.mxu0 0.0
    %530 = vmatprep.subr.mxu0 0.0
    %531 = vmatpush1.msra.mxu0 0.0
    %532 = vmatprep.subr.mxu0 0.0
    %533 = vmatpush1.msra.mxu0 0.0
    %534 = vmatprep.subr.mxu0 0.0
    %535 = vmatpush1.msra.mxu0 0.0
    %536 = vmatprep.subr.mxu0 0.0
    %537 = vmatpush1.msra.mxu0 0.0
    %538 = vmatprep.subr.mxu0 0.0
    %539 = vmatpush1.msra.mxu0 0.0
    %540 = vmatprep.subr.mxu0 0.0
    %541 = vmatpush1.msra.mxu0 0.0
    %542 = vmatprep.subr.mxu0 0.0
    %543 = vmatpush1.msra.mxu0 0.0
    %544 = vmatprep.subr.mxu0 0.0
    %545 = vmatpush1.msra.mxu0 0.0
    %546 = vmatprep.subr.mxu0 0.0
    %547 = vmatpush1.msra.mxu0 0.0
    %548 = vmatprep.subr.mxu0 0.0
    %549 = vmatpush1.msra.mxu0 0.0
    %550 = vmatprep.subr.mxu0 0.0
    %551 = vmatpush1.msra.mxu0 %v52
    %552 = vmatprep.subr.mxu0 0.0
    %553 = vmatpush1.msra.mxu0 %v51
    %554 = vmatprep.subr.mxu0 0.0
    %555 = vmatpush1.msra.mxu0 %v50
    %556 = vmatprep.subr.mxu0 0.0
    %557 = vmatpush1.msra.mxu0 %v49
    %558 = vmatprep.subr.mxu0 0.0
    %559 = vmatpush2.msra.mxu0 0.0
    %560 = vmatprep.subr.mxu0 0.0
    %561 = vmatpush2.msra.mxu0 0.0
    %562 = vmatprep.subr.mxu0 0.0
    %563 = vmatpush2.msra.mxu0 0.0
    %564 = vmatprep.subr.mxu0 0.0
    %565 = vmatpush2.msra.mxu0 0.0
    %566 = vmatprep.subr.mxu0 0.0
    %567 = vmatpush2.msra.mxu0 0.0
    %568 = vmatprep.subr.mxu0 0.0
    %569 = vmatpush2.msra.mxu0 0.0
    %570 = vmatprep.subr.mxu0 0.0
    %571 = vmatpush2.msra.mxu0 0.0
    %572 = vmatprep.subr.mxu0 0.0
    %573 = vmatpush2.msra.mxu0 0.0
    %574 = vmatprep.subr.mxu0 0.0
    %575 = vmatpush2.msra.mxu0 0.0
    %576 = vmatprep.subr.mxu0 0.0
    %577 = vmatpush2.msra.mxu0 0.0
    %578 = vmatprep.subr.mxu0 0.0
    %579 = vmatpush2.msra.mxu0 0.0
    %580 = vmatprep.subr.mxu0 0.0
    %581 = vmatpush2.msra.mxu0 0.0
    %582 = vmatprep.subr.mxu0 0.0
    %583 = vmatpush2.msra.mxu0 0.0
    %584 = vmatprep.subr.mxu0 0.0
    %585 = vmatpush2.msra.mxu0 0.0
    %586 = vmatprep.subr.mxu0 0.0
    %587 = vmatpush2.msra.mxu0 0.0
    %588 = vmatprep.subr.mxu0 0.0
    %589 = vmatpush2.msra.mxu0 0.0
    %590 = vmatprep.mubr.f32.mxu0 0.0
    %591 = vmatmul.mubr.f32.gmra.mxu0 %v522
    %v592 = vpop.f32.mrf.mxu0
    %v593 = vadd.f32 0.0, %v592
    %v594 = vpop.f32.mrf.mxu0
    %595 = vmatprep.mubr.f32.mxu0 0.0
    %596 = vmatmul.mubr.f32.gmra.mxu0 %v524
    %v597 = vpop.f32.mrf.mxu0
    %v598 = vadd.f32 0.0, %v597
    %v599 = vpop.f32.mrf.mxu0
    %600 = vdwg.mxu0
    %v601 = vadd.f32 %v520, %v593
    %v602 = vadd.f32 %v521, %v598
    %v603 = vxor.u32 %v601, 2147483648
    %v604 = vxor.u32 %v602, 2147483648
    %v605 = vmul.f32 %v603, 1.442695
    %v606 = vpow.pop %v605
    %v607 = vmul.f32 %v604, 1.442695
    %v608 = vpow.pop %v607
    %v609 = vadd.f32 %v606, 1.0
    %v610 = vadd.f32 %v608, 1.0
    %v611 = vrcp.pop %v609
    %v612 = vmul.f32 1.0, %v611
    %v613 = vrcp.pop %v610
    %v614 = vmul.f32 1.0, %v613
    %v615 = vadd.f32 %v593, %v155
    %v616 = vadd.f32 %v598, %v155
    %619 = vrot.lane.b32.xlu0 %v615, 64
    %v620 = vpop.permute.xlu0 %619
    %621 = vrot.lane.b32.xlu0 %v616, 64
    %v622 = vpop.permute.xlu0 %621
    %v625 = vmul.f32 %v612, %v620
    %v626 = vmul.f32 %v614, %v622
    %629 = vrot.lane.b32.xlu0 %v625, 64
    %v630 = vpop.permute.xlu0 %629
    %631 = vrot.lane.b32.xlu0 %v626, 64
    %v632 = vpop.permute.xlu0 %631
    %v635 = vadd.f32 %v520, %v630
    %v636 = vadd.f32 %v521, %v632
    %v637 = vtanh.pop %v635
    %v638 = vtanh.pop %v636
    %v639 = vsub.f32 %v506, %v637
    %v640 = vsub.f32 %v507, %v638
    %643 = vrot.lane.b32.xlu0 %v639, 96
    %v644 = vpop.permute.xlu0 %643
    %645 = vrot.lane.b32.xlu0 %v640, 96
    %v646 = vpop.permute.xlu0 %645
    %v649 = vmul.f32 %v612, %v644
    %v650 = vmul.f32 %v614, %v646
    %653 = vrot.lane.b32.xlu0 %v649, 32
    %v654 = vpop.permute.xlu0 %653
    %655 = vrot.lane.b32.xlu0 %v650, 32
    %v656 = vpop.permute.xlu0 %655
    %v659 = vadd.f32 %v637, %v654
    %v660 = vadd.f32 %v638, %v656
    %663 = vrot.lane.b32.xlu0 %v659, 64
    %v664 = vpop.permute.xlu0 %663
    %665 = vrot.lane.b32.xlu0 %v660, 64
    %v666 = vpop.permute.xlu0 %665
    %s669 = scalar_lea.vmem [#allocation2], 48
    %670 = vst.msk [vmem:[%s669] sm:$0xff] %vm56, %v664
    %671 = vst.msk [vmem:[%s669 + $0x8] sm:$0xff] %vm56, %v666
    %s672 = scalar_lea.vmem [#allocation3], 64
    %v673 = vld [vmem:[%s672] sm:$0xff]
    %v674 = vld [vmem:[%s672 + $0x8] sm:$0xff]
    %v675 = vsel %vm56, %v664, 0
    %v677 = vsel %vm56, %v666, 0
    %679 = vmatprep.subr.mxu0 0.0
    %680 = vmatpush1.msra.mxu0 0.0
    %681 = vmatprep.subr.mxu0 0.0
    %682 = vmatpush1.msra.mxu0 0.0
    %683 = vmatprep.subr.mxu0 0.0
    %684 = vmatpush1.msra.mxu0 0.0
    %685 = vmatprep.subr.mxu0 0.0
    %686 = vmatpush1.msra.mxu0 0.0
    %687 = vmatprep.subr.mxu0 0.0
    %688 = vmatpush1.msra.mxu0 0.0
    %689 = vmatprep.subr.mxu0 0.0
    %690 = vmatpush1.msra.mxu0 0.0
    %691 = vmatprep.subr.mxu0 0.0
    %692 = vmatpush1.msra.mxu0 0.0
    %693 = vmatprep.subr.mxu0 0.0
    %694 = vmatpush1.msra.mxu0 0.0
    %695 = vmatprep.subr.mxu0 0.0
    %696 = vmatpush1.msra.mxu0 0.0
    %697 = vmatprep.subr.mxu0 0.0
    %698 = vmatpush1.msra.mxu0 0.0
    %699 = vmatprep.subr.mxu0 0.0
    %700 = vmatpush1.msra.mxu0 0.0
    %701 = vmatprep.subr.mxu0 0.0
    %702 = vmatpush1.msra.mxu0 0.0
    %703 = vmatprep.subr.mxu0 0.0
    %704 = vmatpush1.msra.mxu0 %v52
    %705 = vmatprep.subr.mxu0 0.0
    %706 = vmatpush1.msra.mxu0 %v51
    %707 = vmatprep.subr.mxu0 0.0
    %708 = vmatpush1.msra.mxu0 %v50
    %709 = vmatprep.subr.mxu0 0.0
    %710 = vmatpush1.msra.mxu0 %v49
    %711 = vmatprep.subr.mxu0 0.0
    %712 = vmatpush2.msra.mxu0 0.0
    %713 = vmatprep.subr.mxu0 0.0
    %714 = vmatpush2.msra.mxu0 0.0
    %715 = vmatprep.subr.mxu0 0.0
    %716 = vmatpush2.msra.mxu0 0.0
    %717 = vmatprep.subr.mxu0 0.0
    %718 = vmatpush2.msra.mxu0 0.0
    %719 = vmatprep.subr.mxu0 0.0
    %720 = vmatpush2.msra.mxu0 0.0
    %721 = vmatprep.subr.mxu0 0.0
    %722 = vmatpush2.msra.mxu0 0.0
    %723 = vmatprep.subr.mxu0 0.0
    %724 = vmatpush2.msra.mxu0 0.0
    %725 = vmatprep.subr.mxu0 0.0
    %726 = vmatpush2.msra.mxu0 0.0
    %727 = vmatprep.subr.mxu0 0.0
    %728 = vmatpush2.msra.mxu0 0.0
    %729 = vmatprep.subr.mxu0 0.0
    %730 = vmatpush2.msra.mxu0 0.0
    %731 = vmatprep.subr.mxu0 0.0
    %732 = vmatpush2.msra.mxu0 0.0
    %733 = vmatprep.subr.mxu0 0.0
    %734 = vmatpush2.msra.mxu0 0.0
    %735 = vmatprep.subr.mxu0 0.0
    %736 = vmatpush2.msra.mxu0 0.0
    %737 = vmatprep.subr.mxu0 0.0
    %738 = vmatpush2.msra.mxu0 0.0
    %739 = vmatprep.subr.mxu0 0.0
    %740 = vmatpush2.msra.mxu0 0.0
    %741 = vmatprep.subr.mxu0 0.0
    %742 = vmatpush2.msra.mxu0 0.0
    %743 = vmatprep.mubr.f32.mxu0 0.0
    %744 = vmatmul.mubr.f32.gmra.mxu0 %v675
    %v745 = vpop.f32.mrf.mxu0
    %v746 = vadd.f32 0.0, %v745
    %v747 = vpop.f32.mrf.mxu0
    %748 = vmatprep.mubr.f32.mxu0 0.0
    %749 = vmatmul.mubr.f32.gmra.mxu0 %v677
    %v750 = vpop.f32.mrf.mxu0
    %v751 = vadd.f32 0.0, %v750
    %v752 = vpop.f32.mrf.mxu0
    %753 = vdwg.mxu0
    %v754 = vadd.f32 %v673, %v746
    %v755 = vadd.f32 %v674, %v751
    %v756 = vxor.u32 %v754, 2147483648
    %v757 = vxor.u32 %v755, 2147483648
    %v758 = vmul.f32 %v756, 1.442695
    %v759 = vpow.pop %v758
    %v760 = vmul.f32 %v757, 1.442695
    %v761 = vpow.pop %v760
    %v762 = vadd.f32 %v759, 1.0
    %v763 = vadd.f32 %v761, 1.0
    %v764 = vrcp.pop %v762
    %v765 = vmul.f32 1.0, %v764
    %v766 = vrcp.pop %v763
    %v767 = vmul.f32 1.0, %v766
    %v768 = vadd.f32 %v746, %v155
    %v769 = vadd.f32 %v751, %v155
    %772 = vrot.lane.b32.xlu0 %v768, 64
    %v773 = vpop.permute.xlu0 %772
    %774 = vrot.lane.b32.xlu0 %v769, 64
    %v775 = vpop.permute.xlu0 %774
    %v778 = vmul.f32 %v765, %v773
    %v779 = vmul.f32 %v767, %v775
    %782 = vrot.lane.b32.xlu0 %v778, 64
    %v783 = vpop.permute.xlu0 %782
    %784 = vrot.lane.b32.xlu0 %v779, 64
    %v785 = vpop.permute.xlu0 %784
    %v788 = vadd.f32 %v673, %v783
    %v789 = vadd.f32 %v674, %v785
    %v790 = vtanh.pop %v788
    %v791 = vtanh.pop %v789
    %v792 = vsub.f32 %v659, %v790
    %v793 = vsub.f32 %v660, %v791
    %796 = vrot.lane.b32.xlu0 %v792, 96
    %v797 = vpop.permute.xlu0 %796
    %798 = vrot.lane.b32.xlu0 %v793, 96
    %v799 = vpop.permute.xlu0 %798
    %v802 = vmul.f32 %v765, %v797
    %v803 = vmul.f32 %v767, %v799
    %806 = vrot.lane.b32.xlu0 %v802, 32
    %v807 = vpop.permute.xlu0 %806
    %808 = vrot.lane.b32.xlu0 %v803, 32
    %v809 = vpop.permute.xlu0 %808
    %v812 = vadd.f32 %v790, %v807
    %v813 = vadd.f32 %v791, %v809
    %816 = vrot.lane.b32.xlu0 %v812, 64
    %v817 = vpop.permute.xlu0 %816
    %818 = vrot.lane.b32.xlu0 %v813, 64
    %v819 = vpop.permute.xlu0 %818
    %s822 = scalar_lea.vmem [#allocation2], 64
    %823 = vst.msk [vmem:[%s822] sm:$0xff] %vm56, %v817
    %824 = vst.msk [vmem:[%s822 + $0x8] sm:$0xff] %vm56, %v819
    %s825 = scalar_lea.vmem [#allocation3], 80
    %v826 = vld [vmem:[%s825] sm:$0xff]
    %v827 = vld [vmem:[%s825 + $0x8] sm:$0xff]
    %v828 = vsel %vm56, %v817, 0
    %v830 = vsel %vm56, %v819, 0
    %832 = vmatprep.subr.mxu0 0.0
    %833 = vmatpush1.msra.mxu0 0.0
    %834 = vmatprep.subr.mxu0 0.0
    %835 = vmatpush1.msra.mxu0 0.0
    %836 = vmatprep.subr.mxu0 0.0
    %837 = vmatpush1.msra.mxu0 0.0
    %838 = vmatprep.subr.mxu0 0.0
    %839 = vmatpush1.msra.mxu0 0.0
    %840 = vmatprep.subr.mxu0 0.0
    %841 = vmatpush1.msra.mxu0 0.0
    %842 = vmatprep.subr.mxu0 0.0
    %843 = vmatpush1.msra.mxu0 0.0
    %844 = vmatprep.subr.mxu0 0.0
    %845 = vmatpush1.msra.mxu0 0.0
    %846 = vmatprep.subr.mxu0 0.0
    %847 = vmatpush1.msra.mxu0 0.0
    %848 = vmatprep.subr.mxu0 0.0
    %849 = vmatpush1.msra.mxu0 0.0
    %850 = vmatprep.subr.mxu0 0.0
    %851 = vmatpush1.msra.mxu0 0.0
    %852 = vmatprep.subr.mxu0 0.0
    %853 = vmatpush1.msra.mxu0 0.0
    %854 = vmatprep.subr.mxu0 0.0
    %855 = vmatpush1.msra.mxu0 0.0
    %856 = vmatprep.subr.mxu0 0.0
    %857 = vmatpush1.msra.mxu0 %v52
    %858 = vmatprep.subr.mxu0 0.0
    %859 = vmatpush1.msra.mxu0 %v51
    %860 = vmatprep.subr.mxu0 0.0
    %861 = vmatpush1.msra.mxu0 %v50
    %862 = vmatprep.subr.mxu0 0.0
    %863 = vmatpush1.msra.mxu0 %v49
    %864 = vmatprep.subr.mxu0 0.0
    %865 = vmatpush2.msra.mxu0 0.0
    %866 = vmatprep.subr.mxu0 0.0
    %867 = vmatpush2.msra.mxu0 0.0
    %868 = vmatprep.subr.mxu0 0.0
    %869 = vmatpush2.msra.mxu0 0.0
    %870 = vmatprep.subr.mxu0 0.0
    %871 = vmatpush2.msra.mxu0 0.0
    %872 = vmatprep.subr.mxu0 0.0
    %873 = vmatpush2.msra.mxu0 0.0
    %874 = vmatprep.subr.mxu0 0.0
    %875 = vmatpush2.msra.mxu0 0.0
    %876 = vmatprep.subr.mxu0 0.0
    %877 = vmatpush2.msra.mxu0 0.0
    %878 = vmatprep.subr.mxu0 0.0
    %879 = vmatpush2.msra.mxu0 0.0
    %880 = vmatprep.subr.mxu0 0.0
    %881 = vmatpush2.msra.mxu0 0.0
    %882 = vmatprep.subr.mxu0 0.0
    %883 = vmatpush2.msra.mxu0 0.0
    %884 = vmatprep.subr.mxu0 0.0
    %885 = vmatpush2.msra.mxu0 0.0
    %886 = vmatprep.subr.mxu0 0.0
    %887 = vmatpush2.msra.mxu0 0.0
    %888 = vmatprep.subr.mxu0 0.0
    %889 = vmatpush2.msra.mxu0 0.0
    %890 = vmatprep.subr.mxu0 0.0
    %891 = vmatpush2.msra.mxu0 0.0
    %892 = vmatprep.subr.mxu0 0.0
    %893 = vmatpush2.msra.mxu0 0.0
    %894 = vmatprep.subr.mxu0 0.0
    %895 = vmatpush2.msra.mxu0 0.0
    %896 = vmatprep.mubr.f32.mxu0 0.0
    %897 = vmatmul.mubr.f32.gmra.mxu0 %v828
    %v898 = vpop.f32.mrf.mxu0
    %v899 = vadd.f32 0.0, %v898
    %v900 = vpop.f32.mrf.mxu0
    %901 = vmatprep.mubr.f32.mxu0 0.0
    %902 = vmatmul.mubr.f32.gmra.mxu0 %v830
    %v903 = vpop.f32.mrf.mxu0
    %v904 = vadd.f32 0.0, %v903
    %v905 = vpop.f32.mrf.mxu0
    %906 = vdwg.mxu0
    %v907 = vadd.f32 %v826, %v899
    %v908 = vadd.f32 %v827, %v904
    %v909 = vxor.u32 %v907, 2147483648
    %v910 = vxor.u32 %v908, 2147483648
    %v911 = vmul.f32 %v909, 1.442695
    %v912 = vpow.pop %v911
    %v913 = vmul.f32 %v910, 1.442695
    %v914 = vpow.pop %v913
    %v915 = vadd.f32 %v912, 1.0
    %v916 = vadd.f32 %v914, 1.0
    %v917 = vrcp.pop %v915
    %v918 = vmul.f32 1.0, %v917
    %v919 = vrcp.pop %v916
    %v920 = vmul.f32 1.0, %v919
    %v921 = vadd.f32 %v899, %v155
    %v922 = vadd.f32 %v904, %v155
    %925 = vrot.lane.b32.xlu0 %v921, 64
    %v926 = vpop.permute.xlu0 %925
    %927 = vrot.lane.b32.xlu0 %v922, 64
    %v928 = vpop.permute.xlu0 %927
    %v931 = vmul.f32 %v918, %v926
    %v932 = vmul.f32 %v920, %v928
    %935 = vrot.lane.b32.xlu0 %v931, 64
    %v936 = vpop.permute.xlu0 %935
    %937 = vrot.lane.b32.xlu0 %v932, 64
    %v938 = vpop.permute.xlu0 %937
    %v941 = vadd.f32 %v826, %v936
    %v942 = vadd.f32 %v827, %v938
    %v943 = vtanh.pop %v941
    %v944 = vtanh.pop %v942
    %v945 = vsub.f32 %v812, %v943
    %v946 = vsub.f32 %v813, %v944
    %949 = vrot.lane.b32.xlu0 %v945, 96
    %v950 = vpop.permute.xlu0 %949
    %951 = vrot.lane.b32.xlu0 %v946, 96
    %v952 = vpop.permute.xlu0 %951
    %v955 = vmul.f32 %v918, %v950
    %v956 = vmul.f32 %v920, %v952
    %959 = vrot.lane.b32.xlu0 %v955, 32
    %v960 = vpop.permute.xlu0 %959
    %961 = vrot.lane.b32.xlu0 %v956, 32
    %v962 = vpop.permute.xlu0 %961
    %v965 = vadd.f32 %v943, %v960
    %v966 = vadd.f32 %v944, %v962
    %969 = vrot.lane.b32.xlu0 %v965, 64
    %v970 = vpop.permute.xlu0 %969
    %971 = vrot.lane.b32.xlu0 %v966, 64
    %v972 = vpop.permute.xlu0 %971
    %s975 = scalar_lea.vmem [#allocation2], 80
    %976 = vst.msk [vmem:[%s975] sm:$0xff] %vm56, %v970
    %977 = vst.msk [vmem:[%s975 + $0x8] sm:$0xff] %vm56, %v972
    %s978 = scalar_lea.vmem [#allocation3], 96
    %v979 = vld [vmem:[%s978] sm:$0xff]
    %v980 = vld [vmem:[%s978 + $0x8] sm:$0xff]
    %v981 = vsel %vm56, %v970, 0
    %v983 = vsel %vm56, %v972, 0
    %985 = vmatprep.subr.mxu0 0.0
    %986 = vmatpush1.msra.mxu0 0.0
    %987 = vmatprep.subr.mxu0 0.0
    %988 = vmatpush1.msra.mxu0 0.0
    %989 = vmatprep.subr.mxu0 0.0
    %990 = vmatpush1.msra.mxu0 0.0
    %991 = vmatprep.subr.mxu0 0.0
    %992 = vmatpush1.msra.mxu0 0.0
    %993 = vmatprep.subr.mxu0 0.0
    %994 = vmatpush1.msra.mxu0 0.0
    %995 = vmatprep.subr.mxu0 0.0
    %996 = vmatpush1.msra.mxu0 0.0
    %997 = vmatprep.subr.mxu0 0.0
    %998 = vmatpush1.msra.mxu0 0.0
    %999 = vmatprep.subr.mxu0 0.0
    %1000 = vmatpush1.msra.mxu0 0.0
    %1001 = vmatprep.subr.mxu0 0.0
    %1002 = vmatpush1.msra.mxu0 0.0
    %1003 = vmatprep.subr.mxu0 0.0
    %1004 = vmatpush1.msra.mxu0 0.0
    %1005 = vmatprep.subr.mxu0 0.0
    %1006 = vmatpush1.msra.mxu0 0.0
    %1007 = vmatprep.subr.mxu0 0.0
    %1008 = vmatpush1.msra.mxu0 0.0
    %1009 = vmatprep.subr.mxu0 0.0
    %1010 = vmatpush1.msra.mxu0 %v52
    %1011 = vmatprep.subr.mxu0 0.0
    %1012 = vmatpush1.msra.mxu0 %v51
    %1013 = vmatprep.subr.mxu0 0.0
    %1014 = vmatpush1.msra.mxu0 %v50
    %1015 = vmatprep.subr.mxu0 0.0
    %1016 = vmatpush1.msra.mxu0 %v49
    %1017 = vmatprep.subr.mxu0 0.0
    %1018 = vmatpush2.msra.mxu0 0.0
    %1019 = vmatprep.subr.mxu0 0.0
    %1020 = vmatpush2.msra.mxu0 0.0
    %1021 = vmatprep.subr.mxu0 0.0
    %1022 = vmatpush2.msra.mxu0 0.0
    %1023 = vmatprep.subr.mxu0 0.0
    %1024 = vmatpush2.msra.mxu0 0.0
    %1025 = vmatprep.subr.mxu0 0.0
    %1026 = vmatpush2.msra.mxu0 0.0
    %1027 = vmatprep.subr.mxu0 0.0
    %1028 = vmatpush2.msra.mxu0 0.0
    %1029 = vmatprep.subr.mxu0 0.0
    %1030 = vmatpush2.msra.mxu0 0.0
    %1031 = vmatprep.subr.mxu0 0.0
    %1032 = vmatpush2.msra.mxu0 0.0
    %1033 = vmatprep.subr.mxu0 0.0
    %1034 = vmatpush2.msra.mxu0 0.0
    %1035 = vmatprep.subr.mxu0 0.0
    %1036 = vmatpush2.msra.mxu0 0.0
    %1037 = vmatprep.subr.mxu0 0.0
    %1038 = vmatpush2.msra.mxu0 0.0
    %1039 = vmatprep.subr.mxu0 0.0
    %1040 = vmatpush2.msra.mxu0 0.0
    %1041 = vmatprep.subr.mxu0 0.0
    %1042 = vmatpush2.msra.mxu0 0.0
    %1043 = vmatprep.subr.mxu0 0.0
    %1044 = vmatpush2.msra.mxu0 0.0
    %1045 = vmatprep.subr.mxu0 0.0
    %1046 = vmatpush2.msra.mxu0 0.0
    %1047 = vmatprep.subr.mxu0 0.0
    %1048 = vmatpush2.msra.mxu0 0.0
    %1049 = vmatprep.mubr.f32.mxu0 0.0
    %1050 = vmatmul.mubr.f32.gmra.mxu0 %v981
    %v1051 = vpop.f32.mrf.mxu0
    %v1052 = vadd.f32 0.0, %v1051
    %v1053 = vpop.f32.mrf.mxu0
    %1054 = vmatprep.mubr.f32.mxu0 0.0
    %1055 = vmatmul.mubr.f32.gmra.mxu0 %v983
    %v1056 = vpop.f32.mrf.mxu0
    %v1057 = vadd.f32 0.0, %v1056
    %v1058 = vpop.f32.mrf.mxu0
    %1059 = vdwg.mxu0
    %v1060 = vadd.f32 %v979, %v1052
    %v1061 = vadd.f32 %v980, %v1057
    %v1062 = vxor.u32 %v1060, 2147483648
    %v1063 = vxor.u32 %v1061, 2147483648
    %v1064 = vmul.f32 %v1062, 1.442695
    %v1065 = vpow.pop %v1064
    %v1066 = vmul.f32 %v1063, 1.442695
    %v1067 = vpow.pop %v1066
    %v1068 = vadd.f32 %v1065, 1.0
    %v1069 = vadd.f32 %v1067, 1.0
    %v1070 = vrcp.pop %v1068
    %v1071 = vmul.f32 1.0, %v1070
    %v1072 = vrcp.pop %v1069
    %v1073 = vmul.f32 1.0, %v1072
    %v1074 = vadd.f32 %v1052, %v155
    %v1075 = vadd.f32 %v1057, %v155
    %1078 = vrot.lane.b32.xlu0 %v1074, 64
    %v1079 = vpop.permute.xlu0 %1078
    %1080 = vrot.lane.b32.xlu0 %v1075, 64
    %v1081 = vpop.permute.xlu0 %1080
    %v1084 = vmul.f32 %v1071, %v1079
    %v1085 = vmul.f32 %v1073, %v1081
    %1088 = vrot.lane.b32.xlu0 %v1084, 64
    %v1089 = vpop.permute.xlu0 %1088
    %1090 = vrot.lane.b32.xlu0 %v1085, 64
    %v1091 = vpop.permute.xlu0 %1090
    %v1094 = vadd.f32 %v979, %v1089
    %v1095 = vadd.f32 %v980, %v1091
    %v1096 = vtanh.pop %v1094
    %v1097 = vtanh.pop %v1095
    %v1098 = vsub.f32 %v965, %v1096
    %v1099 = vsub.f32 %v966, %v1097
    %1102 = vrot.lane.b32.xlu0 %v1098, 96
    %v1103 = vpop.permute.xlu0 %1102
    %1104 = vrot.lane.b32.xlu0 %v1099, 96
    %v1105 = vpop.permute.xlu0 %1104
    %v1108 = vmul.f32 %v1071, %v1103
    %v1109 = vmul.f32 %v1073, %v1105
    %1112 = vrot.lane.b32.xlu0 %v1108, 32
    %v1113 = vpop.permute.xlu0 %1112
    %1114 = vrot.lane.b32.xlu0 %v1109, 32
    %v1115 = vpop.permute.xlu0 %1114
    %v1118 = vadd.f32 %v1096, %v1113
    %v1119 = vadd.f32 %v1097, %v1115
    %1122 = vrot.lane.b32.xlu0 %v1118, 64
    %v1123 = vpop.permute.xlu0 %1122
    %1124 = vrot.lane.b32.xlu0 %v1119, 64
    %v1125 = vpop.permute.xlu0 %1124
    %s1128 = scalar_lea.vmem [#allocation2], 96
    %1129 = vst.msk [vmem:[%s1128] sm:$0xff] %vm56, %v1123
    %1130 = vst.msk [vmem:[%s1128 + $0x8] sm:$0xff] %vm56, %v1125
    %s1131 = scalar_lea.vmem [#allocation3], 112
    %v1132 = vld [vmem:[%s1131] sm:$0xff]
    %v1133 = vld [vmem:[%s1131 + $0x8] sm:$0xff]
    %v1134 = vsel %vm56, %v1123, 0
    %v1136 = vsel %vm56, %v1125, 0
    %1138 = vmatprep.subr.mxu0 0.0
    %1139 = vmatpush1.msra.mxu0 0.0
    %1140 = vmatprep.subr.mxu0 0.0
    %1141 = vmatpush1.msra.mxu0 0.0
    %1142 = vmatprep.subr.mxu0 0.0
    %1143 = vmatpush1.msra.mxu0 0.0
    %1144 = vmatprep.subr.mxu0 0.0
    %1145 = vmatpush1.msra.mxu0 0.0
    %1146 = vmatprep.subr.mxu0 0.0
    %1147 = vmatpush1.msra.mxu0 0.0
    %1148 = vmatprep.subr.mxu0 0.0
    %1149 = vmatpush1.msra.mxu0 0.0
    %1150 = vmatprep.subr.mxu0 0.0
    %1151 = vmatpush1.msra.mxu0 0.0
    %1152 = vmatprep.subr.mxu0 0.0
    %1153 = vmatpush1.msra.mxu0 0.0
    %1154 = vmatprep.subr.mxu0 0.0
    %1155 = vmatpush1.msra.mxu0 0.0
    %1156 = vmatprep.subr.mxu0 0.0
    %1157 = vmatpush1.msra.mxu0 0.0
    %1158 = vmatprep.subr.mxu0 0.0
    %1159 = vmatpush1.msra.mxu0 0.0
    %1160 = vmatprep.subr.mxu0 0.0
    %1161 = vmatpush1.msra.mxu0 0.0
    %1162 = vmatprep.subr.mxu0 0.0
    %1163 = vmatpush1.msra.mxu0 %v52
    %1164 = vmatprep.subr.mxu0 0.0
    %1165 = vmatpush1.msra.mxu0 %v51
    %1166 = vmatprep.subr.mxu0 0.0
    %1167 = vmatpush1.msra.mxu0 %v50
    %1168 = vmatprep.subr.mxu0 0.0
    %1169 = vmatpush1.msra.mxu0 %v49
    %1170 = vmatprep.subr.mxu0 0.0
    %1171 = vmatpush2.msra.mxu0 0.0
    %1172 = vmatprep.subr.mxu0 0.0
    %1173 = vmatpush2.msra.mxu0 0.0
    %1174 = vmatprep.subr.mxu0 0.0
    %1175 = vmatpush2.msra.mxu0 0.0
    %1176 = vmatprep.subr.mxu0 0.0
    %1177 = vmatpush2.msra.mxu0 0.0
    %1178 = vmatprep.subr.mxu0 0.0
    %1179 = vmatpush2.msra.mxu0 0.0
    %1180 = vmatprep.subr.mxu0 0.0
    %1181 = vmatpush2.msra.mxu0 0.0
    %1182 = vmatprep.subr.mxu0 0.0
    %1183 = vmatpush2.msra.mxu0 0.0
    %1184 = vmatprep.subr.mxu0 0.0
    %1185 = vmatpush2.msra.mxu0 0.0
    %1186 = vmatprep.subr.mxu0 0.0
    %1187 = vmatpush2.msra.mxu0 0.0
    %1188 = vmatprep.subr.mxu0 0.0
    %1189 = vmatpush2.msra.mxu0 0.0
    %1190 = vmatprep.subr.mxu0 0.0
    %1191 = vmatpush2.msra.mxu0 0.0
    %1192 = vmatprep.subr.mxu0 0.0
    %1193 = vmatpush2.msra.mxu0 0.0
    %1194 = vmatprep.subr.mxu0 0.0
    %1195 = vmatpush2.msra.mxu0 0.0
    %1196 = vmatprep.subr.mxu0 0.0
    %1197 = vmatpush2.msra.mxu0 0.0
    %1198 = vmatprep.subr.mxu0 0.0
    %1199 = vmatpush2.msra.mxu0 0.0
    %1200 = vmatprep.subr.mxu0 0.0
    %1201 = vmatpush2.msra.mxu0 0.0
    %1202 = vmatprep.mubr.f32.mxu0 0.0
    %1203 = vmatmul.mubr.f32.gmra.mxu0 %v1134
    %v1204 = vpop.f32.mrf.mxu0
    %v1205 = vadd.f32 0.0, %v1204
    %v1206 = vpop.f32.mrf.mxu0
    %1207 = vmatprep.mubr.f32.mxu0 0.0
    %1208 = vmatmul.mubr.f32.gmra.mxu0 %v1136
    %v1209 = vpop.f32.mrf.mxu0
    %v1210 = vadd.f32 0.0, %v1209
    %v1211 = vpop.f32.mrf.mxu0
    %1212 = vdwg.mxu0
    %v1213 = vadd.f32 %v1132, %v1205
    %v1214 = vadd.f32 %v1133, %v1210
    %v1215 = vxor.u32 %v1213, 2147483648
    %v1216 = vxor.u32 %v1214, 2147483648
    %v1217 = vmul.f32 %v1215, 1.442695
    %v1218 = vpow.pop %v1217
    %v1219 = vmul.f32 %v1216, 1.442695
    %v1220 = vpow.pop %v1219
    %v1221 = vadd.f32 %v1218, 1.0
    %v1222 = vadd.f32 %v1220, 1.0
    %v1223 = vrcp.pop %v1221
    %v1224 = vmul.f32 1.0, %v1223
    %v1225 = vrcp.pop %v1222
    %v1226 = vmul.f32 1.0, %v1225
    %v1227 = vadd.f32 %v1205, %v155
    %v1228 = vadd.f32 %v1210, %v155
    %1231 = vrot.lane.b32.xlu0 %v1227, 64
    %v1232 = vpop.permute.xlu0 %1231
    %1233 = vrot.lane.b32.xlu0 %v1228, 64
    %v1234 = vpop.permute.xlu0 %1233
    %v1237 = vmul.f32 %v1224, %v1232
    %v1238 = vmul.f32 %v1226, %v1234
    %1241 = vrot.lane.b32.xlu0 %v1237, 64
    %v1242 = vpop.permute.xlu0 %1241
    %1243 = vrot.lane.b32.xlu0 %v1238, 64
    %v1244 = vpop.permute.xlu0 %1243
    %v1247 = vadd.f32 %v1132, %v1242
    %v1248 = vadd.f32 %v1133, %v1244
    %v1249 = vtanh.pop %v1247
    %v1250 = vtanh.pop %v1248
    %v1251 = vsub.f32 %v1118, %v1249
    %v1252 = vsub.f32 %v1119, %v1250
    %1255 = vrot.lane.b32.xlu0 %v1251, 96
    %v1256 = vpop.permute.xlu0 %1255
    %1257 = vrot.lane.b32.xlu0 %v1252, 96
    %v1258 = vpop.permute.xlu0 %1257
    %v1261 = vmul.f32 %v1224, %v1256
    %v1262 = vmul.f32 %v1226, %v1258
    %1265 = vrot.lane.b32.xlu0 %v1261, 32
    %v1266 = vpop.permute.xlu0 %1265
    %1267 = vrot.lane.b32.xlu0 %v1262, 32
    %v1268 = vpop.permute.xlu0 %1267
    %v1271 = vadd.f32 %v1249, %v1266
    %v1272 = vadd.f32 %v1250, %v1268
    %1275 = vrot.lane.b32.xlu0 %v1271, 64
    %v1276 = vpop.permute.xlu0 %1275
    %1277 = vrot.lane.b32.xlu0 %v1272, 64
    %v1278 = vpop.permute.xlu0 %1277
    %s1281 = scalar_lea.vmem [#allocation2], 112
    %1282 = vst.msk [vmem:[%s1281] sm:$0xff] %vm56, %v1276
    %1283 = vst.msk [vmem:[%s1281 + $0x8] sm:$0xff] %vm56, %v1278
    %v1284 = vld [vmem:[#allocation2] sm:$0xff]
    %v1285 = vld [vmem:[#allocation2 + $0x8] sm:$0xff]
    %v1286 = vld [vmem:[#allocation2 + $0x10] sm:$0xff]
    %v1287 = vld [vmem:[#allocation2 + $0x18] sm:$0xff]
    %v1288 = vld [vmem:[#allocation2 + $0x20] sm:$0xff]
    %v1289 = vld [vmem:[#allocation2 + $0x28] sm:$0xff]
    %v1290 = vld [vmem:[#allocation2 + $0x30] sm:$0xff]
    %v1291 = vld [vmem:[#allocation2 + $0x38] sm:$0xff]
    %v1292 = vld [vmem:[#allocation2 + $0x40] sm:$0xff]
    %v1293 = vld [vmem:[#allocation2 + $0x48] sm:$0xff]
    %v1294 = vld [vmem:[#allocation2 + $0x50] sm:$0xff]
    %v1295 = vld [vmem:[#allocation2 + $0x58] sm:$0xff]
    %v1296 = vld [vmem:[#allocation2 + $0x60] sm:$0xff]
    %v1297 = vld [vmem:[#allocation2 + $0x68] sm:$0xff]
    %v1298 = vld [vmem:[#allocation2 + $0x70] sm:$0xff]
    %v1299 = vld [vmem:[#allocation2 + $0x78] sm:$0xff]
    %v1300 = vcombine.low %v1284, %v1288
    %v1301 = vcombine.high %v1284, %v1288
    %v1303 = vunpack.c.l.s4 1983009808
    %v1304 = vunpack.c.0.s8 %v1303
    %v1305 = vlaneseq
    %v1306 = vshrl.u32 %v1305, 7
    %v1307 = vsub.s32 %v1304, %v1306
    %v1308 = vrot.slane %v1300, %v1307
    %v1310 = vunpack.c.l.s4 1983009808
    %v1311 = vunpack.c.0.s8 %v1310
    %v1312 = vlaneseq
    %v1313 = vshrl.u32 %v1312, 7
    %v1314 = vsub.s32 %v1311, %v1313
    %v1315 = vrot.slane %v1301, %v1314
    %v1316 = vcombine.low %v1286, %v1290
    %v1317 = vcombine.high %v1286, %v1290
    %v1319 = vunpack.c.l.s4 1983009808
    %v1320 = vunpack.c.0.s8 %v1319
    %v1321 = vlaneseq
    %v1322 = vshrl.u32 %v1321, 7
    %v1323 = vsub.s32 %v1320, %v1322
    %v1324 = vrot.slane %v1316, %v1323
    %v1326 = vunpack.c.l.s4 1983009808
    %v1327 = vunpack.c.0.s8 %v1326
    %v1328 = vlaneseq
    %v1329 = vshrl.u32 %v1328, 7
    %v1330 = vsub.s32 %v1327, %v1329
    %v1331 = vrot.slane %v1317, %v1330
    %v1332 = vcombine.low %v1292, %v1296
    %v1333 = vcombine.high %v1292, %v1296
    %v1335 = vunpack.c.l.s4 1983009808
    %v1336 = vunpack.c.0.s8 %v1335
    %v1337 = vlaneseq
    %v1338 = vshrl.u32 %v1337, 7
    %v1339 = vsub.s32 %v1336, %v1338
    %v1340 = vrot.slane %v1332, %v1339
    %v1342 = vunpack.c.l.s4 1983009808
    %v1343 = vunpack.c.0.s8 %v1342
    %v1344 = vlaneseq
    %v1345 = vshrl.u32 %v1344, 7
    %v1346 = vsub.s32 %v1343, %v1345
    %v1347 = vrot.slane %v1333, %v1346
    %v1348 = vcombine.low %v1294, %v1298
    %v1349 = vcombine.high %v1294, %v1298
    %v1351 = vunpack.c.l.s4 1983009808
    %v1352 = vunpack.c.0.s8 %v1351
    %v1353 = vlaneseq
    %v1354 = vshrl.u32 %v1353, 7
    %v1355 = vsub.s32 %v1352, %v1354
    %v1356 = vrot.slane %v1348, %v1355
    %v1358 = vunpack.c.l.s4 1983009808
    %v1359 = vunpack.c.0.s8 %v1358
    %v1360 = vlaneseq
    %v1361 = vshrl.u32 %v1360, 7
    %v1362 = vsub.s32 %v1359, %v1361
    %v1363 = vrot.slane %v1349, %v1362
    %v1364 = vcombine.low %v1308, %v1324
    %v1365 = vcombine.high %v1308, %v1324
    %v1367 = vunpack.c.l.s4 1934713408
    %v1368 = vunpack.c.0.s8 %v1367
    %v1369 = vlaneseq
    %v1370 = vshrl.u32 %v1369, 7
    %v1371 = vsub.s32 %v1368, %v1370
    %v1372 = vrot.slane %v1364, %v1371
    %v1374 = vunpack.c.l.s4 1934713408
    %v1375 = vunpack.c.0.s8 %v1374
    %v1376 = vlaneseq
    %v1377 = vshrl.u32 %v1376, 7
    %v1378 = vsub.s32 %v1375, %v1377
    %v1379 = vrot.slane %v1365, %v1378
    %v1380 = vcombine.low %v1315, %v1331
    %v1381 = vcombine.high %v1315, %v1331
    %v1383 = vunpack.c.l.s4 1934713408
    %v1384 = vunpack.c.0.s8 %v1383
    %v1385 = vlaneseq
    %v1386 = vshrl.u32 %v1385, 7
    %v1387 = vsub.s32 %v1384, %v1386
    %v1388 = vrot.slane %v1380, %v1387
    %v1390 = vunpack.c.l.s4 1934713408
    %v1391 = vunpack.c.0.s8 %v1390
    %v1392 = vlaneseq
    %v1393 = vshrl.u32 %v1392, 7
    %v1394 = vsub.s32 %v1391, %v1393
    %v1395 = vrot.slane %v1381, %v1394
    %v1396 = vcombine.low %v1340, %v1356
    %v1397 = vcombine.high %v1340, %v1356
    %v1399 = vunpack.c.l.s4 1934713408
    %v1400 = vunpack.c.0.s8 %v1399
    %v1401 = vlaneseq
    %v1402 = vshrl.u32 %v1401, 7
    %v1403 = vsub.s32 %v1400, %v1402
    %v1404 = vrot.slane %v1396, %v1403
    %v1406 = vunpack.c.l.s4 1934713408
    %v1407 = vunpack.c.0.s8 %v1406
    %v1408 = vlaneseq
    %v1409 = vshrl.u32 %v1408, 7
    %v1410 = vsub.s32 %v1407, %v1409
    %v1411 = vrot.slane %v1397, %v1410
    %v1412 = vcombine.low %v1347, %v1363
    %v1413 = vcombine.high %v1347, %v1363
    %v1415 = vunpack.c.l.s4 1934713408
    %v1416 = vunpack.c.0.s8 %v1415
    %v1417 = vlaneseq
    %v1418 = vshrl.u32 %v1417, 7
    %v1419 = vsub.s32 %v1416, %v1418
    %v1420 = vrot.slane %v1412, %v1419
    %v1422 = vunpack.c.l.s4 1934713408
    %v1423 = vunpack.c.0.s8 %v1422
    %v1424 = vlaneseq
    %v1425 = vshrl.u32 %v1424, 7
    %v1426 = vsub.s32 %v1423, %v1425
    %v1427 = vrot.slane %v1413, %v1426
    %v1428 = vcombine.low %v1372, %v1404
    %v1429 = vcombine.high %v1372, %v1404
    %v1430 = vcombine.low %v1379, %v1411
    %v1431 = vcombine.high %v1379, %v1411
    %v1432 = vcombine.low %v1388, %v1420
    %v1433 = vcombine.high %v1388, %v1420
    %v1434 = vcombine.low %v1395, %v1427
    %v1435 = vcombine.high %v1395, %v1427
    %v1436 = vcombine.low %v1285, %v1289
    %v1437 = vcombine.high %v1285, %v1289
    %v1439 = vunpack.c.l.s4 1983009808
    %v1440 = vunpack.c.0.s8 %v1439
    %v1441 = vlaneseq
    %v1442 = vshrl.u32 %v1441, 7
    %v1443 = vsub.s32 %v1440, %v1442
    %v1444 = vrot.slane %v1436, %v1443
    %v1446 = vunpack.c.l.s4 1983009808
    %v1447 = vunpack.c.0.s8 %v1446
    %v1448 = vlaneseq
    %v1449 = vshrl.u32 %v1448, 7
    %v1450 = vsub.s32 %v1447, %v1449
    %v1451 = vrot.slane %v1437, %v1450
    %v1452 = vcombine.low %v1287, %v1291
    %v1453 = vcombine.high %v1287, %v1291
    %v1455 = vunpack.c.l.s4 1983009808
    %v1456 = vunpack.c.0.s8 %v1455
    %v1457 = vlaneseq
    %v1458 = vshrl.u32 %v1457, 7
    %v1459 = vsub.s32 %v1456, %v1458
    %v1460 = vrot.slane %v1452, %v1459
    %v1462 = vunpack.c.l.s4 1983009808
    %v1463 = vunpack.c.0.s8 %v1462
    %v1464 = vlaneseq
    %v1465 = vshrl.u32 %v1464, 7
    %v1466 = vsub.s32 %v1463, %v1465
    %v1467 = vrot.slane %v1453, %v1466
    %v1468 = vcombine.low %v1293, %v1297
    %v1469 = vcombine.high %v1293, %v1297
    %v1471 = vunpack.c.l.s4 1983009808
    %v1472 = vunpack.c.0.s8 %v1471
    %v1473 = vlaneseq
    %v1474 = vshrl.u32 %v1473, 7
    %v1475 = vsub.s32 %v1472, %v1474
    %v1476 = vrot.slane %v1468, %v1475
    %v1478 = vunpack.c.l.s4 1983009808
    %v1479 = vunpack.c.0.s8 %v1478
    %v1480 = vlaneseq
    %v1481 = vshrl.u32 %v1480, 7
    %v1482 = vsub.s32 %v1479, %v1481
    %v1483 = vrot.slane %v1469, %v1482
    %v1484 = vcombine.low %v1295, %v1299
    %v1485 = vcombine.high %v1295, %v1299
    %v1487 = vunpack.c.l.s4 1983009808
    %v1488 = vunpack.c.0.s8 %v1487
    %v1489 = vlaneseq
    %v1490 = vshrl.u32 %v1489, 7
    %v1491 = vsub.s32 %v1488, %v1490
    %v1492 = vrot.slane %v1484, %v1491
    %v1494 = vunpack.c.l.s4 1983009808
    %v1495 = vunpack.c.0.s8 %v1494
    %v1496 = vlaneseq
    %v1497 = vshrl.u32 %v1496, 7
    %v1498 = vsub.s32 %v1495, %v1497
    %v1499 = vrot.slane %v1485, %v1498
    %v1500 = vcombine.low %v1444, %v1460
    %v1501 = vcombine.high %v1444, %v1460
    %v1503 = vunpack.c.l.s4 1934713408
    %v1504 = vunpack.c.0.s8 %v1503
    %v1505 = vlaneseq
    %v1506 = vshrl.u32 %v1505, 7
    %v1507 = vsub.s32 %v1504, %v1506
    %v1508 = vrot.slane %v1500, %v1507
    %v1510 = vunpack.c.l.s4 1934713408
    %v1511 = vunpack.c.0.s8 %v1510
    %v1512 = vlaneseq
    %v1513 = vshrl.u32 %v1512, 7
    %v1514 = vsub.s32 %v1511, %v1513
    %v1515 = vrot.slane %v1501, %v1514
    %v1516 = vcombine.low %v1451, %v1467
    %v1517 = vcombine.high %v1451, %v1467
    %v1519 = vunpack.c.l.s4 1934713408
    %v1520 = vunpack.c.0.s8 %v1519
    %v1521 = vlaneseq
    %v1522 = vshrl.u32 %v1521, 7
    %v1523 = vsub.s32 %v1520, %v1522
    %v1524 = vrot.slane %v1516, %v1523
    %v1526 = vunpack.c.l.s4 1934713408
    %v1527 = vunpack.c.0.s8 %v1526
    %v1528 = vlaneseq
    %v1529 = vshrl.u32 %v1528, 7
    %v1530 = vsub.s32 %v1527, %v1529
    %v1531 = vrot.slane %v1517, %v1530
    %v1532 = vcombine.low %v1476, %v1492
    %v1533 = vcombine.high %v1476, %v1492
    %v1535 = vunpack.c.l.s4 1934713408
    %v1536 = vunpack.c.0.s8 %v1535
    %v1537 = vlaneseq
    %v1538 = vshrl.u32 %v1537, 7
    %v1539 = vsub.s32 %v1536, %v1538
    %v1540 = vrot.slane %v1532, %v1539
    %v1542 = vunpack.c.l.s4 1934713408
    %v1543 = vunpack.c.0.s8 %v1542
    %v1544 = vlaneseq
    %v1545 = vshrl.u32 %v1544, 7
    %v1546 = vsub.s32 %v1543, %v1545
    %v1547 = vrot.slane %v1533, %v1546
    %v1548 = vcombine.low %v1483, %v1499
    %v1549 = vcombine.high %v1483, %v1499
    %v1551 = vunpack.c.l.s4 1934713408
    %v1552 = vunpack.c.0.s8 %v1551
    %v1553 = vlaneseq
    %v1554 = vshrl.u32 %v1553, 7
    %v1555 = vsub.s32 %v1552, %v1554
    %v1556 = vrot.slane %v1548, %v1555
    %v1558 = vunpack.c.l.s4 1934713408
    %v1559 = vunpack.c.0.s8 %v1558
    %v1560 = vlaneseq
    %v1561 = vshrl.u32 %v1560, 7
    %v1562 = vsub.s32 %v1559, %v1561
    %v1563 = vrot.slane %v1549, %v1562
    %v1564 = vcombine.low %v1508, %v1540
    %v1565 = vcombine.high %v1508, %v1540
    %v1566 = vcombine.low %v1515, %v1547
    %v1567 = vcombine.high %v1515, %v1547
    %v1568 = vcombine.low %v1524, %v1556
    %v1569 = vcombine.high %v1524, %v1556
    %v1570 = vcombine.low %v1531, %v1563
    %v1571 = vcombine.high %v1531, %v1563
    %1573 = vrot.lane.b32.xlu0 %v1429, 32
    %v1574 = vpop.permute.xlu0 %1573
    %1577 = vrot.lane.b32.xlu0 %v1430, 64
    %v1578 = vpop.permute.xlu0 %1577
    %1581 = vrot.lane.b32.xlu0 %v1431, 96
    %v1582 = vpop.permute.xlu0 %1581
    %1585 = vrot.lane.b32.xlu0 %v1433, 32
    %v1586 = vpop.permute.xlu0 %1585
    %1589 = vrot.lane.b32.xlu0 %v1434, 64
    %v1590 = vpop.permute.xlu0 %1589
    %1593 = vrot.lane.b32.xlu0 %v1435, 96
    %v1594 = vpop.permute.xlu0 %1593
    %1597 = vrot.lane.b32.xlu0 %v1565, 32
    %v1598 = vpop.permute.xlu0 %1597
    %1601 = vrot.lane.b32.xlu0 %v1566, 64
    %v1602 = vpop.permute.xlu0 %1601
    %1605 = vrot.lane.b32.xlu0 %v1567, 96
    %v1606 = vpop.permute.xlu0 %1605
    %1609 = vrot.lane.b32.xlu0 %v1569, 32
    %v1610 = vpop.permute.xlu0 %1609
    %1613 = vrot.lane.b32.xlu0 %v1570, 64
    %v1614 = vpop.permute.xlu0 %1613
    %1617 = vrot.lane.b32.xlu0 %v1571, 96
    %v1618 = vpop.permute.xlu0 %1617
    %v1620 = vsel %vm56, %v1428, %v1574
    %vm1621 = vcmask 523264
    %v1622 = vsel %vm1621, %v1620, %v1578
    %vm1623 = vcmask 785408
    %v1624 = vsel %vm1623, %v1622, %v1582
    %v1625 = vsel %vm56, %v1432, %v1586
    %v1626 = vsel %vm1621, %v1625, %v1590
    %v1627 = vsel %vm1623, %v1626, %v1594
    %v1628 = vsel %vm56, %v1564, %v1598
    %v1629 = vsel %vm1621, %v1628, %v1602
    %v1630 = vsel %vm1623, %v1629, %v1606
    %v1631 = vsel %vm56, %v1568, %v1610
    %v1632 = vsel %vm1621, %v1631, %v1614
    %v1633 = vsel %vm1623, %v1632, %v1618
    %v1634 = vld [vmem:[%s3] sm:$0xff]
    %v1635 = vld [vmem:[%s4] sm:$0xff]
    %1637 = vset.pattern.permute.xlu0 0
    %1638 = vperm.xlu0 %1637, %v1635
    %v1639 = vpop.permute.xlu0 %1638
    %vm1641 = vcmask 64512
    %v1643 = vsel %vm1641, %v1634, 0
    %1645 = vmatprep.subr.mxu0 0.0
    %1646 = vmatpush1.msra.mxu0 0.0
    %1647 = vmatprep.subr.mxu0 0.0
    %1648 = vmatpush1.msra.mxu0 0.0
    %1649 = vmatprep.subr.mxu0 0.0
    %1650 = vmatpush1.msra.mxu0 0.0
    %1651 = vmatprep.subr.mxu0 0.0
    %1652 = vmatpush1.msra.mxu0 0.0
    %1653 = vmatprep.subr.mxu0 0.0
    %1654 = vmatpush1.msra.mxu0 0.0
    %1655 = vmatprep.subr.mxu0 0.0
    %1656 = vmatpush1.msra.mxu0 0.0
    %1657 = vmatprep.subr.mxu0 0.0
    %1658 = vmatpush1.msra.mxu0 0.0
    %1659 = vmatprep.subr.mxu0 0.0
    %1660 = vmatpush1.msra.mxu0 0.0
    %1661 = vmatprep.subr.mxu0 0.0
    %1662 = vmatpush1.msra.mxu0 0.0
    %1663 = vmatprep.subr.mxu0 0.0
    %1664 = vmatpush1.msra.mxu0 0.0
    %1665 = vmatprep.subr.mxu0 0.0
    %1666 = vmatpush1.msra.mxu0 0.0
    %1667 = vmatprep.subr.mxu0 0.0
    %1668 = vmatpush1.msra.mxu0 0.0
    %1669 = vmatprep.subr.mxu0 0.0
    %1670 = vmatpush1.msra.mxu0 0.0
    %1671 = vmatprep.subr.mxu0 0.0
    %1672 = vmatpush1.msra.mxu0 0.0
    %1673 = vmatprep.subr.mxu0 0.0
    %1674 = vmatpush1.msra.mxu0 0.0
    %1675 = vmatprep.subr.mxu0 %v1627
    %1676 = vmatpush1.msra.mxu0 %v1624
    %1677 = vmatprep.subr.mxu0 0.0
    %1678 = vmatpush2.msra.mxu0 0.0
    %1679 = vmatprep.subr.mxu0 0.0
    %1680 = vmatpush2.msra.mxu0 0.0
    %1681 = vmatprep.subr.mxu0 0.0
    %1682 = vmatpush2.msra.mxu0 0.0
    %1683 = vmatprep.subr.mxu0 0.0
    %1684 = vmatpush2.msra.mxu0 0.0
    %1685 = vmatprep.subr.mxu0 0.0
    %1686 = vmatpush2.msra.mxu0 0.0
    %1687 = vmatprep.subr.mxu0 0.0
    %1688 = vmatpush2.msra.mxu0 0.0
    %1689 = vmatprep.subr.mxu0 0.0
    %1690 = vmatpush2.msra.mxu0 0.0
    %1691 = vmatprep.subr.mxu0 0.0
    %1692 = vmatpush2.msra.mxu0 0.0
    %1693 = vmatprep.subr.mxu0 0.0
    %1694 = vmatpush2.msra.mxu0 0.0
    %1695 = vmatprep.subr.mxu0 0.0
    %1696 = vmatpush2.msra.mxu0 0.0
    %1697 = vmatprep.subr.mxu0 0.0
    %1698 = vmatpush2.msra.mxu0 0.0
    %1699 = vmatprep.subr.mxu0 0.0
    %1700 = vmatpush2.msra.mxu0 0.0
    %1701 = vmatprep.subr.mxu0 0.0
    %1702 = vmatpush2.msra.mxu0 0.0
    %1703 = vmatprep.subr.mxu0 0.0
    %1704 = vmatpush2.msra.mxu0 0.0
    %1705 = vmatprep.subr.mxu0 0.0
    %1706 = vmatpush2.msra.mxu0 0.0
    %1707 = vmatprep.subr.mxu0 0.0
    %1708 = vmatpush2.msra.mxu0 0.0
    %1709 = vmatprep.mubr.f32.mxu0 0.0
    %1710 = vmatmul.mubr.f32.gmra.mxu0 %v1643
    %v1711 = vpop.f32.mrf.mxu0
    %v1712 = vadd.f32 %v1639, %v1711
    %v1713 = vpop.f32.mrf.mxu0
    %v1714 = vadd.f32 %v1639, %v1713
    %1715 = vdwg.mxu0
    %1716 = vmatprep.subr.mxu0 0.0
    %1717 = vmatpush1.msra.mxu0 0.0
    %1718 = vmatprep.subr.mxu0 0.0
    %1719 = vmatpush1.msra.mxu0 0.0
    %1720 = vmatprep.subr.mxu0 0.0
    %1721 = vmatpush1.msra.mxu0 0.0
    %1722 = vmatprep.subr.mxu0 0.0
    %1723 = vmatpush1.msra.mxu0 0.0
    %1724 = vmatprep.subr.mxu0 0.0
    %1725 = vmatpush1.msra.mxu0 0.0
    %1726 = vmatprep.subr.mxu0 0.0
    %1727 = vmatpush1.msra.mxu0 0.0
    %1728 = vmatprep.subr.mxu0 0.0
    %1729 = vmatpush1.msra.mxu0 0.0
    %1730 = vmatprep.subr.mxu0 0.0
    %1731 = vmatpush1.msra.mxu0 0.0
    %1732 = vmatprep.subr.mxu0 0.0
    %1733 = vmatpush1.msra.mxu0 0.0
    %1734 = vmatprep.subr.mxu0 0.0
    %1735 = vmatpush1.msra.mxu0 0.0
    %1736 = vmatprep.subr.mxu0 0.0
    %1737 = vmatpush1.msra.mxu0 0.0
    %1738 = vmatprep.subr.mxu0 0.0
    %1739 = vmatpush1.msra.mxu0 0.0
    %1740 = vmatprep.subr.mxu0 0.0
    %1741 = vmatpush1.msra.mxu0 0.0
    %1742 = vmatprep.subr.mxu0 0.0
    %1743 = vmatpush1.msra.mxu0 0.0
    %1744 = vmatprep.subr.mxu0 0.0
    %1745 = vmatpush1.msra.mxu0 0.0
    %1746 = vmatprep.subr.mxu0 %v1633
    %1747 = vmatpush1.msra.mxu0 %v1630
    %1748 = vmatprep.subr.mxu0 0.0
    %1749 = vmatpush2.msra.mxu0 0.0
    %1750 = vmatprep.subr.mxu0 0.0
    %1751 = vmatpush2.msra.mxu0 0.0
    %1752 = vmatprep.subr.mxu0 0.0
    %1753 = vmatpush2.msra.mxu0 0.0
    %1754 = vmatprep.subr.mxu0 0.0
    %1755 = vmatpush2.msra.mxu0 0.0
    %1756 = vmatprep.subr.mxu0 0.0
    %1757 = vmatpush2.msra.mxu0 0.0
    %1758 = vmatprep.subr.mxu0 0.0
    %1759 = vmatpush2.msra.mxu0 0.0
    %1760 = vmatprep.subr.mxu0 0.0
    %1761 = vmatpush2.msra.mxu0 0.0
    %1762 = vmatprep.subr.mxu0 0.0
    %1763 = vmatpush2.msra.mxu0 0.0
    %1764 = vmatprep.subr.mxu0 0.0
    %1765 = vmatpush2.msra.mxu0 0.0
    %1766 = vmatprep.subr.mxu0 0.0
    %1767 = vmatpush2.msra.mxu0 0.0
    %1768 = vmatprep.subr.mxu0 0.0
    %1769 = vmatpush2.msra.mxu0 0.0
    %1770 = vmatprep.subr.mxu0 0.0
    %1771 = vmatpush2.msra.mxu0 0.0
    %1772 = vmatprep.subr.mxu0 0.0
    %1773 = vmatpush2.msra.mxu0 0.0
    %1774 = vmatprep.subr.mxu0 0.0
    %1775 = vmatpush2.msra.mxu0 0.0
    %1776 = vmatprep.subr.mxu0 0.0
    %1777 = vmatpush2.msra.mxu0 0.0
    %1778 = vmatprep.subr.mxu0 0.0
    %1779 = vmatpush2.msra.mxu0 0.0
    %1780 = vmatprep.mubr.f32.mxu0 0.0
    %1781 = vmatmul.mubr.f32.gmra.mxu0 %v1643
    %v1782 = vpop.f32.mrf.mxu0
    %v1783 = vadd.f32 %v1639, %v1782
    %v1784 = vpop.f32.mrf.mxu0
    %v1785 = vadd.f32 %v1639, %v1784
    %1786 = vdwg.mxu0
    %v1787 = vrot.slane %v1712, 4
    %v1788 = vmax.f32 %v1712, %v1787
    %v1789 = vrot.slane %v1788, 2
    %v1790 = vmax.f32 %v1788, %v1789
    %v1791 = vrot.slane %v1790, 1
    %v1792 = vmax.f32 %v1790, %v1791
    %v1793 = vrot.slane %v1714, 4
    %v1794 = vmax.f32 %v1714, %v1793
    %v1795 = vrot.slane %v1794, 2
    %v1796 = vmax.f32 %v1794, %v1795
    %v1797 = vrot.slane %v1796, 1
    %v1798 = vmax.f32 %v1796, %v1797
    %v1799 = vrot.slane %v1783, 4
    %v1800 = vmax.f32 %v1783, %v1799
    %v1801 = vrot.slane %v1800, 2
    %v1802 = vmax.f32 %v1800, %v1801
    %v1803 = vrot.slane %v1802, 1
    %v1804 = vmax.f32 %v1802, %v1803
    %v1805 = vrot.slane %v1785, 4
    %v1806 = vmax.f32 %v1785, %v1805
    %v1807 = vrot.slane %v1806, 2
    %v1808 = vmax.f32 %v1806, %v1807
    %v1809 = vrot.slane %v1808, 1
    %v1810 = vmax.f32 %v1808, %v1809
    %v1811 = vsub.f32 %v1712, %v1792
    %v1812 = vsub.f32 %v1714, %v1798
    %v1813 = vsub.f32 %v1783, %v1804
    %v1814 = vsub.f32 %v1785, %v1810
    %v1815 = vmul.f32 %v1811, 1.442695
    %v1816 = vpow.pop %v1815
    %v1817 = vmul.f32 %v1812, 1.442695
    %v1818 = vpow.pop %v1817
    %v1819 = vmul.f32 %v1813, 1.442695
    %v1820 = vpow.pop %v1819
    %v1821 = vmul.f32 %v1814, 1.442695
    %v1822 = vpow.pop %v1821
    %v1823 = vrot.slane %v1816, 4
    %v1824 = vadd.f32 %v1816, %v1823
    %v1825 = vrot.slane %v1824, 2
    %v1826 = vadd.f32 %v1824, %v1825
    %v1827 = vrot.slane %v1826, 1
    %v1828 = vadd.f32 %v1826, %v1827
    %v1829 = vrot.slane %v1818, 4
    %v1830 = vadd.f32 %v1818, %v1829
    %v1831 = vrot.slane %v1830, 2
    %v1832 = vadd.f32 %v1830, %v1831
    %v1833 = vrot.slane %v1832, 1
    %v1834 = vadd.f32 %v1832, %v1833
    %v1835 = vrot.slane %v1820, 4
    %v1836 = vadd.f32 %v1820, %v1835
    %v1837 = vrot.slane %v1836, 2
    %v1838 = vadd.f32 %v1836, %v1837
    %v1839 = vrot.slane %v1838, 1
    %v1840 = vadd.f32 %v1838, %v1839
    %v1841 = vrot.slane %v1822, 4
    %v1842 = vadd.f32 %v1822, %v1841
    %v1843 = vrot.slane %v1842, 2
    %v1844 = vadd.f32 %v1842, %v1843
    %v1845 = vrot.slane %v1844, 1
    %v1846 = vadd.f32 %v1844, %v1845
    %v1847 = vrcp.pop %v1828
    %v1848 = vrcp.pop %v1834
    %v1849 = vrcp.pop %v1840
    %v1850 = vrcp.pop %v1846
    %v1851 = vmul.f32 %v1816, %v1847
    %v1852 = vmul.f32 %v1818, %v1848
    %v1853 = vmul.f32 %v1820, %v1849
    %v1854 = vmul.f32 %v1822, %v1850
    %v1855 = vmul.f32 %v1624, %v1851
    %v1856 = vmul.f32 %v1627, %v1852
    %v1857 = vmul.f32 %v1630, %v1853
    %v1858 = vmul.f32 %v1633, %v1854
    %1859 = vst [vmem:[#allocation8] sm:$0xff] %v1855
    %1860 = vst [vmem:[#allocation8 + $0x8] sm:$0xff] %v1856
    %1861 = vst [vmem:[#allocation8 + $0x10] sm:$0xff] %v1857
    %1862 = vst [vmem:[#allocation8 + $0x18] sm:$0xff] %v1858
    // Predicated region
    $region30: #{tpu_custom_call.1} parent=1 // pred_check
      _
    $region31: #{tpu_custom_call.1} parent=1 // pred_check_branch
      %1864 = sbr.rel (0) target = $region33
    $region32: #{tpu_custom_call.1} parent=1 // pred_region
      %s1866 = ssub.s32 512, 512
      %1867 = vsyncadd [#allocation5], %s1866
      %s1869 = sshll.u32 [#allocation8], 4
      %s1870 = int_to_ptr.vmem [resolvable:$true] %s1869
      %1872 = dma.vmem_to_hbm [thread:$0]  %s1870, 512, %s5, [#allocation5]
    $region33: #{tpu_custom_call.1} parent=1 // pred_fallthru
      _
    // Predicated region
    $region34: #{tpu_custom_call.1} parent=1 // pred_check
      _
    $region35: #{tpu_custom_call.1} parent=1 // pred_check_branch
      %1874 = sbr.rel (0) target = $region37
    $region36: #{tpu_custom_call.1} parent=1 // pred_region
      %1875 = dma.done [#allocation5], 512
    $region37: #{tpu_custom_call.1} parent=1 // pred_fallthru
      _
    %1876 = vsyncpa [#allocation4], 1
    %1877 = vsyncpa [#allocation7], 1
    %1878 = vsyncpa [#allocation5], 1

</llo_original>
